<compile_context>
chip_gen: v7x
topology: tpu7x:2x2x1
jax: 0.10.0
libtpu: 0.0.40
codegen_flags: <defaults>
</compile_context>

<pallas_src>
import jax
import jax.numpy as jnp
from jax import lax
from jax.experimental import pallas as pl
from jax.experimental.pallas import tpu as pltpu

_EPS = 1e-5  # PyTorch InstanceNorm2d default


def _pick_batch_tile(batch, max_tile=4):
    """Largest divisor of `batch` <= max_tile, preferring >= 2 grid steps
    (so both v7x TensorCores get work and DMAs pipeline across steps)."""
    divs = [d for d in range(1, min(batch, max_tile) + 1) if batch % d == 0]
    for d in reversed(divs):
        if batch // d >= 2:
            return d
    return divs[-1]


def _make_kernel(H, W, TB, Cin, C1, pad):
    HW = H * W
    taps = [(dy, dx) for dy in range(3) for dx in range(3)]

    def kernel(x_ref, w1_ref, g1_ref, b1_ref, w2_ref, g2_ref, b2_ref, o_ref,
               halo1, col1, halo2, col2):
        # Loop-invariant loads / constants, hoisted out of the sample loop.
        w1 = w1_ref[...]                       # (C1, 9*Cin)
        w2 = w2_ref[...]                       # (C1, 9*C1)
        g1, b1 = g1_ref[...], b1_ref[...]      # (C1, 1)
        g2, b2 = g2_ref[...], b2_ref[...]

        # Column-wrap masks for the flattened-spatial shifted taps.
        lane = lax.broadcasted_iota(jnp.int32, (1, HW), 1)
        xcol = lane % W
        not_left = xcol != 0                   # invalid taps when dx == 0
        not_right = xcol != (W - 1)            # invalid taps when dx == 2

        # Zero only the halo pads (lane-tile aligned regions), every step so it
        # is safe under megacore grid partitioning; interior is overwritten.
        halo1[:, :pad] = jnp.zeros((Cin, pad), jnp.float32)
        halo1[:, pad + HW:] = jnp.zeros((Cin, pad), jnp.float32)
        halo2[:, :pad] = jnp.zeros((C1, pad), jnp.float32)
        halo2[:, pad + HW:] = jnp.zeros((C1, pad), jnp.float32)

        def im2col(src, halo, col, c):
            # src: (c, HW) f32.  Builds the (9*c, HW) im2col matrix in `col`.
            halo[:, pad:pad + HW] = src        # lane-tile aligned store
            hv = halo[...]                     # (c, pad + HW + pad)
            for t, (dy, dx) in enumerate(taps):
                off = pad + (dy - 1) * W + (dx - 1)
                tap = hv[:, off:off + HW]      # static lane-offset slice
                if dx == 0:
                    tap = jnp.where(not_left, tap, 0.0)
                elif dx == 2:
                    tap = jnp.where(not_right, tap, 0.0)
                col[t * c:(t + 1) * c, :] = tap
            return col[...]

        def inst_norm(y, gamma, beta):
            # y: (c, HW) f32; one-pass per-channel stats along the lane axis.
            inv_n = jnp.float32(1.0 / HW)
            mean = jnp.sum(y, axis=-1, keepdims=True) * inv_n
            ex2 = jnp.sum(y * y, axis=-1, keepdims=True) * inv_n
            var = ex2 - mean * mean
            scale = gamma * lax.rsqrt(var + _EPS)
            return y * scale + (beta - mean * scale)

        for b in range(TB):                    # static unroll, TB is small
            xb = x_ref[b].astype(jnp.float32)  # (Cin, HW)
            h = jnp.dot(w1, im2col(xb, halo1, col1, Cin),
                        preferred_element_type=jnp.float32,
                        precision=lax.Precision.HIGHEST)
            h = inst_norm(h, g1, b1)           # (C1, HW), stays in VMEM/vregs
            y = jnp.dot(w2, im2col(h, halo2, col2, C1),
                        preferred_element_type=jnp.float32,
                        precision=lax.Precision.HIGHEST)
            o_ref[b] = inst_norm(y, g2, b2).astype(o_ref.dtype)

    return kernel


def pednet_early_conv_block(x, w1, g1, b1, w2, g2, b2, *, max_batch_tile=4):
    """Forward pass matching PedNetEarlyConvBlock.

    x : (B, Cin, H, W)  NCHW float32 (PyTorch layout)
    w1: (C, Cin, 3, 3)  Conv2d weight (bias=False);  g1, b1: (C,) affine
    w2: (C, C, 3, 3);                                g2, b2: (C,)
    returns (B, C, H, W)
    """
    B, Cin, H, W = x.shape
    C1 = w1.shape[0]
    HW = H * W
    pad = 128                               # lane-aligned halo, needs >= W + 1
    assert W + 1 <= pad, "spatial width too large for the fixed 128-lane halo"

    TB = _pick_batch_tile(B, max_batch_tile)
    grid = (B // TB,)

    # Free reshapes only: no activation transposes, no HBM pad copy.
    x_flat = x.reshape(B, Cin, HW)
    # Weight k-ordering (dy, dx, cin) matches the in-kernel im2col row order.
    w1_flat = jnp.transpose(w1, (0, 2, 3, 1)).reshape(C1, 9 * Cin)
    w2_flat = jnp.transpose(w2, (0, 2, 3, 1)).reshape(C1, 9 * C1)
    g1c, b1c = g1.reshape(C1, 1), b1.reshape(C1, 1)
    g2c, b2c = g2.reshape(C1, 1), b2.reshape(C1, 1)

    kernel = _make_kernel(H, W, TB, Cin, C1, pad)

    flops = 2 * B * HW * 9 * (Cin * C1 + C1 * C1)
    bytes_accessed = 4 * (B * Cin * HW + B * C1 * HW
                          + 9 * Cin * C1 + 9 * C1 * C1 + 4 * C1)

    def const(shape):
        # Constant index_map -> stays VMEM-resident, no re-DMA across steps.
        return pl.BlockSpec(shape, lambda i, _n=len(shape): (0,) * _n)

    out_flat = pl.pallas_call(
        kernel,
        out_shape=jax.ShapeDtypeStruct((B, C1, HW), x.dtype),
        grid_spec=pltpu.PrefetchScalarGridSpec(
            num_scalar_prefetch=0,
            grid=grid,
            in_specs=[
                pl.BlockSpec((TB, Cin, HW), lambda i: (i, 0, 0)),
                const((C1, 9 * Cin)),
                const((C1, 1)), const((C1, 1)),
                const((C1, 9 * C1)),
                const((C1, 1)), const((C1, 1)),
            ],
            out_specs=pl.BlockSpec((TB, C1, HW), lambda i: (i, 0, 0)),
            scratch_shapes=[
                pltpu.VMEM((Cin, 2 * pad + HW), jnp.float32),   # halo, layer 1
                pltpu.VMEM((9 * Cin, HW), jnp.float32),         # im2col, layer 1
                pltpu.VMEM((C1, 2 * pad + HW), jnp.float32),    # halo, layer 2
                pltpu.VMEM((9 * C1, HW), jnp.float32),          # im2col, layer 2
            ],
        ),
        compiler_params=pltpu.CompilerParams(
            dimension_semantics=("parallel",)),
        cost_estimate=pl.CostEstimate(
            flops=flops, transcendentals=2 * B * C1,
            bytes_accessed=bytes_accessed),
    )(x_flat, w1_flat, g1c, b1c, w2_flat, g2c, b2c)

    return out_flat.reshape(B, C1, H, W)


if __name__ == "__main__":
    key = jax.random.PRNGKey(0)
    kx, k1, k2, kg1, kb1, kg2, kb2 = jax.random.split(key, 7)

    B, CIN, COUT, H, W = 2, 4, 8, 16, 16
    x = jax.random.normal(kx, (B, CIN, H, W), jnp.float32)

    # Conv weights (Kaiming-ish scale) + random affine params (PyTorch inits
    # gamma=1, beta=0; random here to exercise the affine path).
    w1 = jax.random.normal(k1, (COUT, CIN, 3, 3), jnp.float32) / jnp.sqrt(9.0 * CIN)
    w2 = jax.random.normal(k2, (COUT, COUT, 3, 3), jnp.float32) / jnp.sqrt(9.0 * COUT)
    g1 = 1.0 + 0.1 * jax.random.normal(kg1, (COUT,), jnp.float32)
    b1 = 0.1 * jax.random.normal(kb1, (COUT,), jnp.float32)
    g2 = 1.0 + 0.1 * jax.random.normal(kg2, (COUT,), jnp.float32)
    b2 = 0.1 * jax.random.normal(kb2, (COUT,), jnp.float32)

    out = pednet_early_conv_block(x, w1, g1, b1, w2, g2, b2)
    out = jax.block_until_ready(out)

    # Pure-JAX reference: conv (SAME, no bias) + instance norm (biased var).
    def ref_block(xx, w, g, b):
        y = lax.conv_general_dilated(
            xx, w, window_strides=(1, 1), padding="SAME",
            dimension_numbers=("NCHW", "OIHW", "NCHW"),
            precision=lax.Precision.HIGHEST)
        mean = y.mean(axis=(2, 3), keepdims=True)
        var = ((y - mean) ** 2).mean(axis=(2, 3), keepdims=True)
        yn = (y - mean) * lax.rsqrt(var + _EPS)
        return yn * g.reshape(1, -1, 1, 1) + b.reshape(1, -1, 1, 1)

    ref = ref_block(ref_block(x, w1, g1, b1), w2, g2, b2)

    assert out.shape == (B, COUT, H, W), out.shape
    max_err = float(jnp.max(jnp.abs(out - ref)))
    # Both sides run HIGHEST-precision matmuls, so observed error is ~1e-5; the
    # 1e-2 margin only guards a potential precision-pass difference between the
    # in-kernel MXU path and the XLA conv.  A semantic bug (wrong tap ordering,
    # padding, or norm) would produce O(1) errors and still fail.
    assert jnp.allclose(out, ref, atol=1e-2, rtol=1e-2), f"mismatch, max_err={max_err}"

    print("KERNEL_OK")
</pallas_src>

<mosaic_0001>
module attributes {stable_mosaic.version = 11 : i64} {
  func.func @kernel(%arg0: i32, %arg1: memref<1x4x256xf32, #tpu.memory_space<vmem>>, %arg2: memref<8x36xf32, #tpu.memory_space<vmem>>, %arg3: memref<8x1xf32, #tpu.memory_space<vmem>>, %arg4: memref<8x1xf32, #tpu.memory_space<vmem>>, %arg5: memref<8x72xf32, #tpu.memory_space<vmem>>, %arg6: memref<8x1xf32, #tpu.memory_space<vmem>>, %arg7: memref<8x1xf32, #tpu.memory_space<vmem>>, %arg8: memref<1x8x256xf32, #tpu.memory_space<vmem>>, %arg9: memref<4x512xf32, #tpu.memory_space<vmem>>, %arg10: memref<36x256xf32, #tpu.memory_space<vmem>>, %arg11: memref<8x512xf32, #tpu.memory_space<vmem>>, %arg12: memref<72x256xf32, #tpu.memory_space<vmem>>) attributes {dimension_semantics = [#tpu.dimension_semantics<parallel>], iteration_bounds = array<i64: 2>, scalar_prefetch = 0 : i64, scratch_operands = 4 : i64, tpu.core_type = #tpu.core_type<tc>, window_params = [{transform_indices = @transform_0, window_bounds = array<i64: 1, 4, 256>}, {pipeline_mode = #tpu.pipeline_mode<synchronous>, transform_indices = @transform_1, window_bounds = array<i64: 8, 36>}, {pipeline_mode = #tpu.pipeline_mode<synchronous>, transform_indices = @transform_2, window_bounds = array<i64: 8, 1>}, {pipeline_mode = #tpu.pipeline_mode<synchronous>, transform_indices = @transform_3, window_bounds = array<i64: 8, 1>}, {pipeline_mode = #tpu.pipeline_mode<synchronous>, transform_indices = @transform_4, window_bounds = array<i64: 8, 72>}, {pipeline_mode = #tpu.pipeline_mode<synchronous>, transform_indices = @transform_5, window_bounds = array<i64: 8, 1>}, {pipeline_mode = #tpu.pipeline_mode<synchronous>, transform_indices = @transform_6, window_bounds = array<i64: 8, 1>}, {transform_indices = @transform_7, window_bounds = array<i64: 1, 8, 256>}]} {
    %c0 = arith.constant 0 : index
    %c0_0 = arith.constant 0 : index
    %0 = vector.load %arg2[%c0, %c0_0] : memref<8x36xf32, #tpu.memory_space<vmem>>, vector<8x36xf32>
    %c0_1 = arith.constant 0 : index
    %c0_2 = arith.constant 0 : index
    %1 = vector.load %arg5[%c0_1, %c0_2] : memref<8x72xf32, #tpu.memory_space<vmem>>, vector<8x72xf32>
    %c0_3 = arith.constant 0 : index
    %c0_4 = arith.constant 0 : index
    %2 = vector.load %arg3[%c0_3, %c0_4] : memref<8x1xf32, #tpu.memory_space<vmem>>, vector<8x1xf32>
    %c0_5 = arith.constant 0 : index
    %c0_6 = arith.constant 0 : index
    %3 = vector.load %arg4[%c0_5, %c0_6] : memref<8x1xf32, #tpu.memory_space<vmem>>, vector<8x1xf32>
    %c0_7 = arith.constant 0 : index
    %c0_8 = arith.constant 0 : index
    %4 = vector.load %arg6[%c0_7, %c0_8] : memref<8x1xf32, #tpu.memory_space<vmem>>, vector<8x1xf32>
    %c0_9 = arith.constant 0 : index
    %c0_10 = arith.constant 0 : index
    %5 = vector.load %arg7[%c0_9, %c0_10] : memref<8x1xf32, #tpu.memory_space<vmem>>, vector<8x1xf32>
    %6 = tpu.iota {dimensions = array<i32: 1>} : vector<1x256xi32>
    %c16_i32 = arith.constant 16 : i32
    %c0_i32 = arith.constant 0 : i32
    %7 = arith.cmpi eq, %c16_i32, %c0_i32 : i32
    %c1_i32 = arith.constant 1 : i32
    %8 = arith.select %7, %c1_i32, %c16_i32 : i32
    %9 = vector.broadcast %8 : i32 to vector<1x256xi32>
    %10 = arith.remsi %6, %9 : vector<1x256xi32>
    %c0_i32_11 = arith.constant 0 : i32
    %11 = vector.broadcast %c0_i32_11 : i32 to vector<1x256xi32>
    %12 = arith.cmpi ne, %10, %11 : vector<1x256xi32>
    %c0_i32_12 = arith.constant 0 : i32
    %13 = vector.broadcast %c0_i32_12 : i32 to vector<1x256xi32>
    %14 = arith.cmpi slt, %10, %13 : vector<1x256xi32>
    %c0_i32_13 = arith.constant 0 : i32
    %15 = arith.cmpi slt, %8, %c0_i32_13 : i32
    %16 = vector.broadcast %15 : i1 to vector<1x256xi1>
    %17 = vector.broadcast %16 : vector<1x256xi1> to vector<1x256xi1>
    %18 = arith.xori %14, %17 : vector<1x256xi1>
    %19 = arith.andi %18, %12 : vector<1x256xi1>
    %20 = vector.broadcast %8 : i32 to vector<1x256xi32>
    %21 = arith.addi %10, %20 : vector<1x256xi32>
    %22 = arith.select %19, %21, %10 : vector<1x256xi1>, vector<1x256xi32>
    %c0_i32_14 = arith.constant 0 : i32
    %23 = vector.broadcast %c0_i32_14 : i32 to vector<1x256xi32>
    %24 = arith.cmpi ne, %22, %23 : vector<1x256xi32>
    %c15_i32 = arith.constant 15 : i32
    %25 = vector.broadcast %c15_i32 : i32 to vector<1x256xi32>
    %26 = arith.cmpi ne, %22, %25 : vector<1x256xi32>
    %cst = arith.constant 0.000000e+00 : f32
    %27 = vector.broadcast %cst : f32 to vector<4x128xf32>
    %c0_15 = arith.constant 0 : index
    %c0_16 = arith.constant 0 : index
    %28 = vector.load %arg9[%c0_15, %c0_16] : memref<4x512xf32, #tpu.memory_space<vmem>>, vector<4x128xf32>
    tpu.vector_store %arg9[%c0_15, %c0_16], %27 {strides = array<i32>} : memref<4x512xf32, #tpu.memory_space<vmem>>, vector<4x128xf32>,
    %cst_17 = arith.constant 0.000000e+00 : f32
    %29 = vector.broadcast %cst_17 : f32 to vector<4x128xf32>
    %c0_18 = arith.constant 0 : index
    %c384 = arith.constant 384 : index
    %30 = vector.load %arg9[%c0_18, %c384] : memref<4x512xf32, #tpu.memory_space<vmem>>, vector<4x128xf32>
    tpu.vector_store %arg9[%c0_18, %c384], %29 {strides = array<i32>} : memref<4x512xf32, #tpu.memory_space<vmem>>, vector<4x128xf32>,
    %cst_19 = arith.constant 0.000000e+00 : f32
    %31 = vector.broadcast %cst_19 : f32 to vector<8x128xf32>
    %c0_20 = arith.constant 0 : index
    %c0_21 = arith.constant 0 : index
    %32 = vector.load %arg11[%c0_20, %c0_21] : memref<8x512xf32, #tpu.memory_space<vmem>>, vector<8x128xf32>
    tpu.vector_store %arg11[%c0_20, %c0_21], %31 {strides = array<i32>} : memref<8x512xf32, #tpu.memory_space<vmem>>, vector<8x128xf32>,
    %cst_22 = arith.constant 0.000000e+00 : f32
    %33 = vector.broadcast %cst_22 : f32 to vector<8x128xf32>
    %c0_23 = arith.constant 0 : index
    %c384_24 = arith.constant 384 : index
    %34 = vector.load %arg11[%c0_23, %c384_24] : memref<8x512xf32, #tpu.memory_space<vmem>>, vector<8x128xf32>
    tpu.vector_store %arg11[%c0_23, %c384_24], %33 {strides = array<i32>} : memref<8x512xf32, #tpu.memory_space<vmem>>, vector<8x128xf32>,
    %c0_25 = arith.constant 0 : index
    %c0_26 = arith.constant 0 : index
    %c0_27 = arith.constant 0 : index
    %35 = vector.load %arg1[%c0_25, %c0_26, %c0_27] : memref<1x4x256xf32, #tpu.memory_space<vmem>>, vector<1x4x256xf32>
    %36 = vector.shape_cast %35 : vector<1x4x256xf32> to vector<4x256xf32>
    %c0_28 = arith.constant 0 : index
    %c128 = arith.constant 128 : index
    %37 = vector.load %arg9[%c0_28, %c128] : memref<4x512xf32, #tpu.memory_space<vmem>>, vector<4x256xf32>
    tpu.vector_store %arg9[%c0_28, %c128], %36 {strides = array<i32>} : memref<4x512xf32, #tpu.memory_space<vmem>>, vector<4x256xf32>,
    %c0_29 = arith.constant 0 : index
    %c0_30 = arith.constant 0 : index
    %38 = vector.load %arg9[%c0_29, %c0_30] : memref<4x512xf32, #tpu.memory_space<vmem>>, vector<4x512xf32>
    %39 = vector.extract_strided_slice %38 {offsets = [0, 111], sizes = [4, 256], strides = [1, 1]} : vector<4x512xf32> to vector<4x256xf32>
    %cst_31 = arith.constant 0.000000e+00 : f32
    %40 = vector.shape_cast %24 : vector<1x256xi1> to vector<1x256xi1>
    %41 = vector.broadcast %40 : vector<1x256xi1> to vector<4x256xi1>
    %42 = vector.broadcast %cst_31 : f32 to vector<4x256xf32>
    %43 = arith.select %41, %39, %42 : vector<4x256xi1>, vector<4x256xf32>
    %c0_32 = arith.constant 0 : index
    %c0_33 = arith.constant 0 : index
    %44 = vector.load %arg10[%c0_32, %c0_33] : memref<36x256xf32, #tpu.memory_space<vmem>>, vector<4x256xf32>
    tpu.vector_store %arg10[%c0_32, %c0_33], %43 {strides = array<i32>} : memref<36x256xf32, #tpu.memory_space<vmem>>, vector<4x256xf32>,
    %45 = vector.extract_strided_slice %38 {offsets = [0, 112], sizes = [4, 256], strides = [1, 1]} : vector<4x512xf32> to vector<4x256xf32>
    %c4 = arith.constant 4 : index
    %c0_34 = arith.constant 0 : index
    %46 = vector.load %arg10[%c4, %c0_34] : memref<36x256xf32, #tpu.memory_space<vmem>>, vector<4x256xf32>
    tpu.vector_store %arg10[%c4, %c0_34], %45 {strides = array<i32>} : memref<36x256xf32, #tpu.memory_space<vmem>>, vector<4x256xf32>,
    %47 = vector.extract_strided_slice %38 {offsets = [0, 113], sizes = [4, 256], strides = [1, 1]} : vector<4x512xf32> to vector<4x256xf32>
    %cst_35 = arith.constant 0.000000e+00 : f32
    %48 = vector.shape_cast %26 : vector<1x256xi1> to vector<1x256xi1>
    %49 = vector.broadcast %48 : vector<1x256xi1> to vector<4x256xi1>
    %50 = vector.broadcast %cst_35 : f32 to vector<4x256xf32>
    %51 = arith.select %49, %47, %50 : vector<4x256xi1>, vector<4x256xf32>
    %c8 = arith.constant 8 : index
    %c0_36 = arith.constant 0 : index
    %52 = vector.load %arg10[%c8, %c0_36] : memref<36x256xf32, #tpu.memory_space<vmem>>, vector<4x256xf32>
    tpu.vector_store %arg10[%c8, %c0_36], %51 {strides = array<i32>} : memref<36x256xf32, #tpu.memory_space<vmem>>, vector<4x256xf32>,
    %53 = vector.extract_strided_slice %38 {offsets = [0, 127], sizes = [4, 256], strides = [1, 1]} : vector<4x512xf32> to vector<4x256xf32>
    %cst_37 = arith.constant 0.000000e+00 : f32
    %54 = vector.shape_cast %24 : vector<1x256xi1> to vector<1x256xi1>
    %55 = vector.broadcast %54 : vector<1x256xi1> to vector<4x256xi1>
    %56 = vector.broadcast %cst_37 : f32 to vector<4x256xf32>
    %57 = arith.select %55, %53, %56 : vector<4x256xi1>, vector<4x256xf32>
    %c12 = arith.constant 12 : index
    %c0_38 = arith.constant 0 : index
    %58 = vector.load %arg10[%c12, %c0_38] : memref<36x256xf32, #tpu.memory_space<vmem>>, vector<4x256xf32>
    tpu.vector_store %arg10[%c12, %c0_38], %57 {strides = array<i32>} : memref<36x256xf32, #tpu.memory_space<vmem>>, vector<4x256xf32>,
    %59 = vector.extract_strided_slice %38 {offsets = [0, 128], sizes = [4, 256], strides = [1, 1]} : vector<4x512xf32> to vector<4x256xf32>
    %c16 = arith.constant 16 : index
    %c0_39 = arith.constant 0 : index
    %60 = vector.load %arg10[%c16, %c0_39] : memref<36x256xf32, #tpu.memory_space<vmem>>, vector<4x256xf32>
    tpu.vector_store %arg10[%c16, %c0_39], %59 {strides = array<i32>} : memref<36x256xf32, #tpu.memory_space<vmem>>, vector<4x256xf32>,
    %61 = vector.extract_strided_slice %38 {offsets = [0, 129], sizes = [4, 256], strides = [1, 1]} : vector<4x512xf32> to vector<4x256xf32>
    %cst_40 = arith.constant 0.000000e+00 : f32
    %62 = vector.shape_cast %26 : vector<1x256xi1> to vector<1x256xi1>
    %63 = vector.broadcast %62 : vector<1x256xi1> to vector<4x256xi1>
    %64 = vector.broadcast %cst_40 : f32 to vector<4x256xf32>
    %65 = arith.select %63, %61, %64 : vector<4x256xi1>, vector<4x256xf32>
    %c20 = arith.constant 20 : index
    %c0_41 = arith.constant 0 : index
    %66 = vector.load %arg10[%c20, %c0_41] : memref<36x256xf32, #tpu.memory_space<vmem>>, vector<4x256xf32>
    tpu.vector_store %arg10[%c20, %c0_41], %65 {strides = array<i32>} : memref<36x256xf32, #tpu.memory_space<vmem>>, vector<4x256xf32>,
    %67 = vector.extract_strided_slice %38 {offsets = [0, 143], sizes = [4, 256], strides = [1, 1]} : vector<4x512xf32> to vector<4x256xf32>
    %cst_42 = arith.constant 0.000000e+00 : f32
    %68 = vector.shape_cast %24 : vector<1x256xi1> to vector<1x256xi1>
    %69 = vector.broadcast %68 : vector<1x256xi1> to vector<4x256xi1>
    %70 = vector.broadcast %cst_42 : f32 to vector<4x256xf32>
    %71 = arith.select %69, %67, %70 : vector<4x256xi1>, vector<4x256xf32>
    %c24 = arith.constant 24 : index
    %c0_43 = arith.constant 0 : index
    %72 = vector.load %arg10[%c24, %c0_43] : memref<36x256xf32, #tpu.memory_space<vmem>>, vector<4x256xf32>
    tpu.vector_store %arg10[%c24, %c0_43], %71 {strides = array<i32>} : memref<36x256xf32, #tpu.memory_space<vmem>>, vector<4x256xf32>,
    %73 = vector.extract_strided_slice %38 {offsets = [0, 144], sizes = [4, 256], strides = [1, 1]} : vector<4x512xf32> to vector<4x256xf32>
    %c28 = arith.constant 28 : index
    %c0_44 = arith.constant 0 : index
    %74 = vector.load %arg10[%c28, %c0_44] : memref<36x256xf32, #tpu.memory_space<vmem>>, vector<4x256xf32>
    tpu.vector_store %arg10[%c28, %c0_44], %73 {strides = array<i32>} : memref<36x256xf32, #tpu.memory_space<vmem>>, vector<4x256xf32>,
    %75 = vector.extract_strided_slice %38 {offsets = [0, 145], sizes = [4, 256], strides = [1, 1]} : vector<4x512xf32> to vector<4x256xf32>
    %cst_45 = arith.constant 0.000000e+00 : f32
    %76 = vector.shape_cast %26 : vector<1x256xi1> to vector<1x256xi1>
    %77 = vector.broadcast %76 : vector<1x256xi1> to vector<4x256xi1>
    %78 = vector.broadcast %cst_45 : f32 to vector<4x256xf32>
    %79 = arith.select %77, %75, %78 : vector<4x256xi1>, vector<4x256xf32>
    %c32 = arith.constant 32 : index
    %c0_46 = arith.constant 0 : index
    %80 = vector.load %arg10[%c32, %c0_46] : memref<36x256xf32, #tpu.memory_space<vmem>>, vector<4x256xf32>
    tpu.vector_store %arg10[%c32, %c0_46], %79 {strides = array<i32>} : memref<36x256xf32, #tpu.memory_space<vmem>>, vector<4x256xf32>,
    %c0_47 = arith.constant 0 : index
    %c0_48 = arith.constant 0 : index
    %81 = vector.load %arg10[%c0_47, %c0_48] : memref<36x256xf32, #tpu.memory_space<vmem>>, vector<36x256xf32>
    %cst_49 = arith.constant dense<0.000000e+00> : vector<8x256xf32>
    %82 = tpu.matmul %0, %81, %cst_49 {dimension_numbers = #tpu.dot_dimension_numbers<[1], [0], [0], [1], [0, 0, 1, 1], [], []>, precision = #tpu.contract_precision<fp32>} : vector<8x36xf32>, vector<36x256xf32>, vector<8x256xf32> -> vector<8x256xf32>
    %cst_50 = arith.constant dense<0.000000e+00> : vector<8xf32>
    %83 = vector.multi_reduction <add>, %82, %cst_50 [1] : vector<8x256xf32> to vector<8xf32>
    %84 = vector.shape_cast %83 : vector<8xf32> to vector<8x1xf32>
    %cst_51 = arith.constant 3.906250e-03 : f32
    %85 = vector.broadcast %cst_51 : f32 to vector<8x1xf32>
    %86 = arith.mulf %84, %85 : vector<8x1xf32>
    %87 = arith.mulf %82, %82 : vector<8x256xf32>
    %cst_52 = arith.constant dense<0.000000e+00> : vector<8xf32>
    %88 = vector.multi_reduction <add>, %87, %cst_52 [1] : vector<8x256xf32> to vector<8xf32>
    %89 = vector.shape_cast %88 : vector<8xf32> to vector<8x1xf32>
    %cst_53 = arith.constant 3.906250e-03 : f32
    %90 = vector.broadcast %cst_53 : f32 to vector<8x1xf32>
    %91 = arith.mulf %89, %90 : vector<8x1xf32>
    %92 = arith.mulf %86, %86 : vector<8x1xf32>
    %93 = arith.subf %91, %92 : vector<8x1xf32>
    %cst_54 = arith.constant 9.99999974E-6 : f32
    %94 = vector.broadcast %cst_54 : f32 to vector<8x1xf32>
    %95 = arith.addf %93, %94 : vector<8x1xf32>
    %96 = math.rsqrt %95 : vector<8x1xf32>
    %97 = arith.mulf %2, %96 : vector<8x1xf32>
    %98 = vector.broadcast %97 : vector<8x1xf32> to vector<8x256xf32>
    %99 = arith.mulf %82, %98 : vector<8x256xf32>
    %100 = arith.mulf %86, %97 : vector<8x1xf32>
    %101 = arith.subf %3, %100 : vector<8x1xf32>
    %102 = vector.broadcast %101 : vector<8x1xf32> to vector<8x256xf32>
    %103 = arith.addf %99, %102 : vector<8x256xf32>
    %c0_55 = arith.constant 0 : index
    %c128_56 = arith.constant 128 : index
    %104 = vector.load %arg11[%c0_55, %c128_56] : memref<8x512xf32, #tpu.memory_space<vmem>>, vector<8x256xf32>
    tpu.vector_store %arg11[%c0_55, %c128_56], %103 {strides = array<i32>} : memref<8x512xf32, #tpu.memory_space<vmem>>, vector<8x256xf32>,
    %c0_57 = arith.constant 0 : index
    %c0_58 = arith.constant 0 : index
    %105 = vector.load %arg11[%c0_57, %c0_58] : memref<8x512xf32, #tpu.memory_space<vmem>>, vector<8x512xf32>
    %106 = vector.extract_strided_slice %105 {offsets = [0, 111], sizes = [8, 256], strides = [1, 1]} : vector<8x512xf32> to vector<8x256xf32>
    %cst_59 = arith.constant 0.000000e+00 : f32
    %107 = vector.shape_cast %24 : vector<1x256xi1> to vector<1x256xi1>
    %108 = vector.broadcast %107 : vector<1x256xi1> to vector<8x256xi1>
    %109 = vector.broadcast %cst_59 : f32 to vector<8x256xf32>
    %110 = arith.select %108, %106, %109 : vector<8x256xi1>, vector<8x256xf32>
    %c0_60 = arith.constant 0 : index
    %c0_61 = arith.constant 0 : index
    %111 = vector.load %arg12[%c0_60, %c0_61] : memref<72x256xf32, #tpu.memory_space<vmem>>, vector<8x256xf32>
    tpu.vector_store %arg12[%c0_60, %c0_61], %110 {strides = array<i32>} : memref<72x256xf32, #tpu.memory_space<vmem>>, vector<8x256xf32>,
    %112 = vector.extract_strided_slice %105 {offsets = [0, 112], sizes = [8, 256], strides = [1, 1]} : vector<8x512xf32> to vector<8x256xf32>
    %c8_62 = arith.constant 8 : index
    %c0_63 = arith.constant 0 : index
    %113 = vector.load %arg12[%c8_62, %c0_63] : memref<72x256xf32, #tpu.memory_space<vmem>>, vector<8x256xf32>
    tpu.vector_store %arg12[%c8_62, %c0_63], %112 {strides = array<i32>} : memref<72x256xf32, #tpu.memory_space<vmem>>, vector<8x256xf32>,
    %114 = vector.extract_strided_slice %105 {offsets = [0, 113], sizes = [8, 256], strides = [1, 1]} : vector<8x512xf32> to vector<8x256xf32>
    %cst_64 = arith.constant 0.000000e+00 : f32
    %115 = vector.shape_cast %26 : vector<1x256xi1> to vector<1x256xi1>
    %116 = vector.broadcast %115 : vector<1x256xi1> to vector<8x256xi1>
    %117 = vector.broadcast %cst_64 : f32 to vector<8x256xf32>
    %118 = arith.select %116, %114, %117 : vector<8x256xi1>, vector<8x256xf32>
    %c16_65 = arith.constant 16 : index
    %c0_66 = arith.constant 0 : index
    %119 = vector.load %arg12[%c16_65, %c0_66] : memref<72x256xf32, #tpu.memory_space<vmem>>, vector<8x256xf32>
    tpu.vector_store %arg12[%c16_65, %c0_66], %118 {strides = array<i32>} : memref<72x256xf32, #tpu.memory_space<vmem>>, vector<8x256xf32>,
    %120 = vector.extract_strided_slice %105 {offsets = [0, 127], sizes = [8, 256], strides = [1, 1]} : vector<8x512xf32> to vector<8x256xf32>
    %cst_67 = arith.constant 0.000000e+00 : f32
    %121 = vector.shape_cast %24 : vector<1x256xi1> to vector<1x256xi1>
    %122 = vector.broadcast %121 : vector<1x256xi1> to vector<8x256xi1>
    %123 = vector.broadcast %cst_67 : f32 to vector<8x256xf32>
    %124 = arith.select %122, %120, %123 : vector<8x256xi1>, vector<8x256xf32>
    %c24_68 = arith.constant 24 : index
    %c0_69 = arith.constant 0 : index
    %125 = vector.load %arg12[%c24_68, %c0_69] : memref<72x256xf32, #tpu.memory_space<vmem>>, vector<8x256xf32>
    tpu.vector_store %arg12[%c24_68, %c0_69], %124 {strides = array<i32>} : memref<72x256xf32, #tpu.memory_space<vmem>>, vector<8x256xf32>,
    %126 = vector.extract_strided_slice %105 {offsets = [0, 128], sizes = [8, 256], strides = [1, 1]} : vector<8x512xf32> to vector<8x256xf32>
    %c32_70 = arith.constant 32 : index
    %c0_71 = arith.constant 0 : index
    %127 = vector.load %arg12[%c32_70, %c0_71] : memref<72x256xf32, #tpu.memory_space<vmem>>, vector<8x256xf32>
    tpu.vector_store %arg12[%c32_70, %c0_71], %126 {strides = array<i32>} : memref<72x256xf32, #tpu.memory_space<vmem>>, vector<8x256xf32>,
    %128 = vector.extract_strided_slice %105 {offsets = [0, 129], sizes = [8, 256], strides = [1, 1]} : vector<8x512xf32> to vector<8x256xf32>
    %cst_72 = arith.constant 0.000000e+00 : f32
    %129 = vector.shape_cast %26 : vector<1x256xi1> to vector<1x256xi1>
    %130 = vector.broadcast %129 : vector<1x256xi1> to vector<8x256xi1>
    %131 = vector.broadcast %cst_72 : f32 to vector<8x256xf32>
    %132 = arith.select %130, %128, %131 : vector<8x256xi1>, vector<8x256xf32>
    %c40 = arith.constant 40 : index
    %c0_73 = arith.constant 0 : index
    %133 = vector.load %arg12[%c40, %c0_73] : memref<72x256xf32, #tpu.memory_space<vmem>>, vector<8x256xf32>
    tpu.vector_store %arg12[%c40, %c0_73], %132 {strides = array<i32>} : memref<72x256xf32, #tpu.memory_space<vmem>>, vector<8x256xf32>,
    %134 = vector.extract_strided_slice %105 {offsets = [0, 143], sizes = [8, 256], strides = [1, 1]} : vector<8x512xf32> to vector<8x256xf32>
    %cst_74 = arith.constant 0.000000e+00 : f32
    %135 = vector.shape_cast %24 : vector<1x256xi1> to vector<1x256xi1>
    %136 = vector.broadcast %135 : vector<1x256xi1> to vector<8x256xi1>
    %137 = vector.broadcast %cst_74 : f32 to vector<8x256xf32>
    %138 = arith.select %136, %134, %137 : vector<8x256xi1>, vector<8x256xf32>
    %c48 = arith.constant 48 : index
    %c0_75 = arith.constant 0 : index
    %139 = vector.load %arg12[%c48, %c0_75] : memref<72x256xf32, #tpu.memory_space<vmem>>, vector<8x256xf32>
    tpu.vector_store %arg12[%c48, %c0_75], %138 {strides = array<i32>} : memref<72x256xf32, #tpu.memory_space<vmem>>, vector<8x256xf32>,
    %140 = vector.extract_strided_slice %105 {offsets = [0, 144], sizes = [8, 256], strides = [1, 1]} : vector<8x512xf32> to vector<8x256xf32>
    %c56 = arith.constant 56 : index
    %c0_76 = arith.constant 0 : index
    %141 = vector.load %arg12[%c56, %c0_76] : memref<72x256xf32, #tpu.memory_space<vmem>>, vector<8x256xf32>
    tpu.vector_store %arg12[%c56, %c0_76], %140 {strides = array<i32>} : memref<72x256xf32, #tpu.memory_space<vmem>>, vector<8x256xf32>,
    %142 = vector.extract_strided_slice %105 {offsets = [0, 145], sizes = [8, 256], strides = [1, 1]} : vector<8x512xf32> to vector<8x256xf32>
    %cst_77 = arith.constant 0.000000e+00 : f32
    %143 = vector.shape_cast %26 : vector<1x256xi1> to vector<1x256xi1>
    %144 = vector.broadcast %143 : vector<1x256xi1> to vector<8x256xi1>
    %145 = vector.broadcast %cst_77 : f32 to vector<8x256xf32>
    %146 = arith.select %144, %142, %145 : vector<8x256xi1>, vector<8x256xf32>
    %c64 = arith.constant 64 : index
    %c0_78 = arith.constant 0 : index
    %147 = vector.load %arg12[%c64, %c0_78] : memref<72x256xf32, #tpu.memory_space<vmem>>, vector<8x256xf32>
    tpu.vector_store %arg12[%c64, %c0_78], %146 {strides = array<i32>} : memref<72x256xf32, #tpu.memory_space<vmem>>, vector<8x256xf32>,
    %c0_79 = arith.constant 0 : index
    %c0_80 = arith.constant 0 : index
    %148 = vector.load %arg12[%c0_79, %c0_80] : memref<72x256xf32, #tpu.memory_space<vmem>>, vector<72x256xf32>
    %cst_81 = arith.constant dense<0.000000e+00> : vector<8x256xf32>
    %149 = tpu.matmul %1, %148, %cst_81 {dimension_numbers = #tpu.dot_dimension_numbers<[1], [0], [0], [1], [0, 0, 1, 1], [], []>, precision = #tpu.contract_precision<fp32>} : vector<8x72xf32>, vector<72x256xf32>, vector<8x256xf32> -> vector<8x256xf32>
    %cst_82 = arith.constant dense<0.000000e+00> : vector<8xf32>
    %150 = vector.multi_reduction <add>, %149, %cst_82 [1] : vector<8x256xf32> to vector<8xf32>
    %151 = vector.shape_cast %150 : vector<8xf32> to vector<8x1xf32>
    %cst_83 = arith.constant 3.906250e-03 : f32
    %152 = vector.broadcast %cst_83 : f32 to vector<8x1xf32>
    %153 = arith.mulf %151, %152 : vector<8x1xf32>
    %154 = arith.mulf %149, %149 : vector<8x256xf32>
    %cst_84 = arith.constant dense<0.000000e+00> : vector<8xf32>
    %155 = vector.multi_reduction <add>, %154, %cst_84 [1] : vector<8x256xf32> to vector<8xf32>
    %156 = vector.shape_cast %155 : vector<8xf32> to vector<8x1xf32>
    %cst_85 = arith.constant 3.906250e-03 : f32
    %157 = vector.broadcast %cst_85 : f32 to vector<8x1xf32>
    %158 = arith.mulf %156, %157 : vector<8x1xf32>
    %159 = arith.mulf %153, %153 : vector<8x1xf32>
    %160 = arith.subf %158, %159 : vector<8x1xf32>
    %cst_86 = arith.constant 9.99999974E-6 : f32
    %161 = vector.broadcast %cst_86 : f32 to vector<8x1xf32>
    %162 = arith.addf %160, %161 : vector<8x1xf32>
    %163 = math.rsqrt %162 : vector<8x1xf32>
    %164 = arith.mulf %4, %163 : vector<8x1xf32>
    %165 = vector.broadcast %164 : vector<8x1xf32> to vector<8x256xf32>
    %166 = arith.mulf %149, %165 : vector<8x256xf32>
    %167 = arith.mulf %153, %164 : vector<8x1xf32>
    %168 = arith.subf %5, %167 : vector<8x1xf32>
    %169 = vector.broadcast %168 : vector<8x1xf32> to vector<8x256xf32>
    %170 = arith.addf %166, %169 : vector<8x256xf32>
    %c0_87 = arith.constant 0 : index
    %c0_88 = arith.constant 0 : index
    %c0_89 = arith.constant 0 : index
    %171 = vector.load %arg8[%c0_87, %c0_88, %c0_89] : memref<1x8x256xf32, #tpu.memory_space<vmem>>, vector<1x8x256xf32>
    %172 = vector.shape_cast %171 : vector<1x8x256xf32> to vector<8x256xf32>
    %173 = vector.shape_cast %170 : vector<8x256xf32> to vector<1x8x256xf32>
    tpu.vector_store %arg8[%c0_87, %c0_88, %c0_89], %173 {strides = array<i32>} : memref<1x8x256xf32, #tpu.memory_space<vmem>>, vector<1x8x256xf32>,
    return
  }
  func.func @transform_0(%arg0: i32) -> (i32, i32, i32) {
    %c0_i32 = arith.constant 0 : i32
    %c0_i32_0 = arith.constant 0 : i32
    %c0_i32_1 = arith.constant 0 : i32
    return %arg0, %c0_i32, %c0_i32_0 : i32, i32, i32
  }
  func.func @transform_1(%arg0: i32) -> (i32, i32) {
    %c0_i32 = arith.constant 0 : i32
    %c0_i32_0 = arith.constant 0 : i32
    %c0_i32_1 = arith.constant 0 : i32
    return %c0_i32, %c0_i32_0 : i32, i32
  }
  func.func @transform_2(%arg0: i32) -> (i32, i32) {
    %c0_i32 = arith.constant 0 : i32
    %c0_i32_0 = arith.constant 0 : i32
    %c0_i32_1 = arith.constant 0 : i32
    return %c0_i32, %c0_i32_0 : i32, i32
  }
  func.func @transform_3(%arg0: i32) -> (i32, i32) {
    %c0_i32 = arith.constant 0 : i32
    %c0_i32_0 = arith.constant 0 : i32
    %c0_i32_1 = arith.constant 0 : i32
    return %c0_i32, %c0_i32_0 : i32, i32
  }
  func.func @transform_4(%arg0: i32) -> (i32, i32) {
    %c0_i32 = arith.constant 0 : i32
    %c0_i32_0 = arith.constant 0 : i32
    %c0_i32_1 = arith.constant 0 : i32
    return %c0_i32, %c0_i32_0 : i32, i32
  }
  func.func @transform_5(%arg0: i32) -> (i32, i32) {
    %c0_i32 = arith.constant 0 : i32
    %c0_i32_0 = arith.constant 0 : i32
    %c0_i32_1 = arith.constant 0 : i32
    return %c0_i32, %c0_i32_0 : i32, i32
  }
  func.func @transform_6(%arg0: i32) -> (i32, i32) {
    %c0_i32 = arith.constant 0 : i32
    %c0_i32_0 = arith.constant 0 : i32
    %c0_i32_1 = arith.constant 0 : i32
    return %c0_i32, %c0_i32_0 : i32, i32
  }
  func.func @transform_7(%arg0: i32) -> (i32, i32, i32) {
    %c0_i32 = arith.constant 0 : i32
    %c0_i32_0 = arith.constant 0 : i32
    %c0_i32_1 = arith.constant 0 : i32
    return %arg0, %c0_i32, %c0_i32_0 : i32, i32, i32
  }
}

</mosaic_0001>

<llo_original>
// kernel: tpu_custom_call.1
$region0: #{tpu_custom_call.1}
  #allocation0 [shape = 'u32[]', space=smem, size = 0x4, offset = 0x4, fixed_abs, tag = 'smem constant byte address 0x4 - core index']
  #allocation1 [shape = 'u32[144,128]{1,0:T(1,128)}', space=vmem, size = 0x12000, scoped, tag = 'internal scratch']
  #allocation2 [shape = 'f32[4,512]{1,0:T(4,128)}', space=vmem, size = 0x2000, scoped, tag = 'scratch operand']
  #allocation3 [shape = 'f32[36,256]{1,0:T(8,128)}', space=vmem, size = 0xa000, scoped, tag = 'scratch operand']
  #allocation4 [shape = 'f32[8,512]{1,0:T(8,128)}', space=vmem, size = 0x4000, scoped, tag = 'scratch operand']
  #allocation5 [shape = 'f32[72,256]{1,0:T(8,128)}', space=vmem, size = 0x12000, scoped, tag = 'scratch operand']
  %s0 = inlined_call_operand.vmem [shape: f32[2,4,256], index: 0, kind: input, shape index: {}]
  %s1 = inlined_call_operand.vmem [shape: f32[8,36], index: 1, kind: input, shape index: {}]
  %s2 = inlined_call_operand.vmem [shape: f32[8,1], index: 2, kind: input, shape index: {}]
  %s3 = inlined_call_operand.vmem [shape: f32[8,1], index: 3, kind: input, shape index: {}]
  %s4 = inlined_call_operand.vmem [shape: f32[8,72], index: 4, kind: input, shape index: {}]
  %s5 = inlined_call_operand.vmem [shape: f32[8,1], index: 5, kind: input, shape index: {}]
  %s6 = inlined_call_operand.vmem [shape: f32[8,1], index: 6, kind: input, shape index: {}]
  %s7 = inlined_call_operand.hbm [shape: f32[2,8,256], index: 7, kind: output, shape index: {}]
  %s8 = sld [smem:[#allocation0]]
  $region61: #{tpu_custom_call.1} parent=0
    _
  %s10 = ssub.s32 1, %s8
  %s11 = scalar_select 0, %s10, %s8
  $region1: #{tpu_custom_call.1} parent=0
    #allocation6 [shape = 'u8[16384]{0}', space=vmem, size = 0x4000, scoped, tag = 'output window, operand 0']
    #allocation7 [shape = 's32[2]{0}', space=sflag, size = 0x8, scoped, tag = 'scoped memory for tpu_custom_call.1']
    %12 = vsyncpa [#allocation7], 0
    %s13 = scalar_lea.sflag [#allocation7], 1
    %14 = vsyncpa %s13, 0
    loop: start=0, step=1, limit=4
    $region2: #{tpu_custom_call.1} parent=1 // loop_pre_header
      _
    $region3: #{tpu_custom_call.1} parent=1 // loop_header
      %s16 = sphi 0, %s20
      %p17 = scmp.ge.s32.totalorder %s16, 4
      %s26 = sphi 0, %s28
      %s29 = sphi 0, %s26
      %s30 = sphi 0, %s29
      %s46 = sphi 0, %s30
      %s50 = sphi 0, %s50
      %s52 = sphi 0, %s50
      %s53 = sphi 0, %s52
      %s67 = sphi 0, %s53
      %s71 = sphi 0, %s71
      %s73 = sphi 0, %s71
      %s74 = sphi 0, %s73
      %s88 = sphi 0, %s74
      %s92 = sphi 0, %s92
      %s94 = sphi 0, %s92
      %s95 = sphi 0, %s94
      %s109 = sphi 0, %s95
      %s113 = sphi 0, %s113
      %s115 = sphi 0, %s113
      %s116 = sphi 0, %s115
      %s130 = sphi 0, %s116
      %s134 = sphi 0, %s134
      %s136 = sphi 0, %s134
      %s137 = sphi 0, %s136
      %s151 = sphi 0, %s137
      %s155 = sphi 0, %s155
      %s157 = sphi 0, %s155
      %s158 = sphi 0, %s157
      %s172 = sphi 0, %s158
      %s178 = sphi 0, %s180
      %s181 = sphi 0, %s178
      %s182 = sphi 0, %s181
      %s198 = sphi 0, %s182
    $region4: #{tpu_custom_call.1} parent=1 // loop_header_branch
      %19 = sbr.rel (%p17) target = $region8
    $region5: #{tpu_custom_call.1} parent=1 // loop_body
      %s21 = ssub.s32 %s16, 1
      %s22 = ssub.s32 %s16, 2
      %s23 = sadd.s32 %s16, 1
      %s24 = ssub.s32 %s16, %s23
      %p25 = scmp.eq.s32.totalorder %s24, 0
      %s27 = sadd.s32 %s26, 1
      %s28 = scalar_select %p25, %s26, %s27
      %p31 = pneg %p25
      %p32 = scmp.eq.s32.totalorder %s16, 1
      %p33 = por %p31, %p32
      %p34 = scmp.ne.s32.totalorder %s26, %s29
      %p35 = scmp.eq.s32.totalorder %s16, 0
      %p36 = por %p34, %p35
      %p37 = scmp.ne.s32.totalorder %s26, %s29
      %p38 = scmp.eq.s32.totalorder %s21, 1
      %p39 = por %p37, %p38
      %p40 = scmp.ne.s32.totalorder %s29, %s30
      %p41 = scmp.eq.s32.totalorder %s21, 0
      %p42 = por %p40, %p41
      %p43 = scmp.ne.s32.totalorder %s29, %s30
      %p44 = scmp.eq.s32.totalorder %s22, 1
      %p45 = por %p43, %p44
      %p47 = scmp.ne.s32.totalorder %s30, %s46
      %p48 = scmp.eq.s32.totalorder %s22, 0
      %p49 = por %p47, %p48
      %s51 = sadd.s32 %s50, 1
      %p54 = scmp.eq.s32.totalorder %s16, 1
      %p55 = scmp.ne.s32.totalorder %s50, %s52
      %p56 = scmp.eq.s32.totalorder %s16, 0
      %p57 = por %p55, %p56
      %p58 = scmp.ne.s32.totalorder %s50, %s52
      %p59 = scmp.eq.s32.totalorder %s21, 1
      %p60 = por %p58, %p59
      %p61 = scmp.ne.s32.totalorder %s52, %s53
      %p62 = scmp.eq.s32.totalorder %s21, 0
      %p63 = por %p61, %p62
      %p64 = scmp.ne.s32.totalorder %s52, %s53
      %p65 = scmp.eq.s32.totalorder %s22, 1
      %p66 = por %p64, %p65
      %p68 = scmp.ne.s32.totalorder %s53, %s67
      %p69 = scmp.eq.s32.totalorder %s22, 0
      %p70 = por %p68, %p69
      %s72 = sadd.s32 %s71, 1
      %p75 = scmp.eq.s32.totalorder %s16, 1
      %p76 = scmp.ne.s32.totalorder %s71, %s73
      %p77 = scmp.eq.s32.totalorder %s16, 0
      %p78 = por %p76, %p77
      %p79 = scmp.ne.s32.totalorder %s71, %s73
      %p80 = scmp.eq.s32.totalorder %s21, 1
      %p81 = por %p79, %p80
      %p82 = scmp.ne.s32.totalorder %s73, %s74
      %p83 = scmp.eq.s32.totalorder %s21, 0
      %p84 = por %p82, %p83
      %p85 = scmp.ne.s32.totalorder %s73, %s74
      %p86 = scmp.eq.s32.totalorder %s22, 1
      %p87 = por %p85, %p86
      %p89 = scmp.ne.s32.totalorder %s74, %s88
      %p90 = scmp.eq.s32.totalorder %s22, 0
      %p91 = por %p89, %p90
      %s93 = sadd.s32 %s92, 1
      %p96 = scmp.eq.s32.totalorder %s16, 1
      %p97 = scmp.ne.s32.totalorder %s92, %s94
      %p98 = scmp.eq.s32.totalorder %s16, 0
      %p99 = por %p97, %p98
      %p100 = scmp.ne.s32.totalorder %s92, %s94
      %p101 = scmp.eq.s32.totalorder %s21, 1
      %p102 = por %p100, %p101
      %p103 = scmp.ne.s32.totalorder %s94, %s95
      %p104 = scmp.eq.s32.totalorder %s21, 0
      %p105 = por %p103, %p104
      %p106 = scmp.ne.s32.totalorder %s94, %s95
      %p107 = scmp.eq.s32.totalorder %s22, 1
      %p108 = por %p106, %p107
      %p110 = scmp.ne.s32.totalorder %s95, %s109
      %p111 = scmp.eq.s32.totalorder %s22, 0
      %p112 = por %p110, %p111
      %s114 = sadd.s32 %s113, 1
      %p117 = scmp.eq.s32.totalorder %s16, 1
      %p118 = scmp.ne.s32.totalorder %s113, %s115
      %p119 = scmp.eq.s32.totalorder %s16, 0
      %p120 = por %p118, %p119
      %p121 = scmp.ne.s32.totalorder %s113, %s115
      %p122 = scmp.eq.s32.totalorder %s21, 1
      %p123 = por %p121, %p122
      %p124 = scmp.ne.s32.totalorder %s115, %s116
      %p125 = scmp.eq.s32.totalorder %s21, 0
      %p126 = por %p124, %p125
      %p127 = scmp.ne.s32.totalorder %s115, %s116
      %p128 = scmp.eq.s32.totalorder %s22, 1
      %p129 = por %p127, %p128
      %p131 = scmp.ne.s32.totalorder %s116, %s130
      %p132 = scmp.eq.s32.totalorder %s22, 0
      %p133 = por %p131, %p132
      %s135 = sadd.s32 %s134, 1
      %p138 = scmp.eq.s32.totalorder %s16, 1
      %p139 = scmp.ne.s32.totalorder %s134, %s136
      %p140 = scmp.eq.s32.totalorder %s16, 0
      %p141 = por %p139, %p140
      %p142 = scmp.ne.s32.totalorder %s134, %s136
      %p143 = scmp.eq.s32.totalorder %s21, 1
      %p144 = por %p142, %p143
      %p145 = scmp.ne.s32.totalorder %s136, %s137
      %p146 = scmp.eq.s32.totalorder %s21, 0
      %p147 = por %p145, %p146
      %p148 = scmp.ne.s32.totalorder %s136, %s137
      %p149 = scmp.eq.s32.totalorder %s22, 1
      %p150 = por %p148, %p149
      %p152 = scmp.ne.s32.totalorder %s137, %s151
      %p153 = scmp.eq.s32.totalorder %s22, 0
      %p154 = por %p152, %p153
      %s156 = sadd.s32 %s155, 1
      %p159 = scmp.eq.s32.totalorder %s16, 1
      %p160 = scmp.ne.s32.totalorder %s155, %s157
      %p161 = scmp.eq.s32.totalorder %s16, 0
      %p162 = por %p160, %p161
      %p163 = scmp.ne.s32.totalorder %s155, %s157
      %p164 = scmp.eq.s32.totalorder %s21, 1
      %p165 = por %p163, %p164
      %p166 = scmp.ne.s32.totalorder %s157, %s158
      %p167 = scmp.eq.s32.totalorder %s21, 0
      %p168 = por %p166, %p167
      %p169 = scmp.ne.s32.totalorder %s157, %s158
      %p170 = scmp.eq.s32.totalorder %s22, 1
      %p171 = por %p169, %p170
      %p173 = scmp.ne.s32.totalorder %s158, %s172
      %p174 = scmp.eq.s32.totalorder %s22, 0
      %p175 = por %p173, %p174
      %s176 = ssub.s32 %s16, %s23
      %p177 = scmp.eq.s32.totalorder %s176, 0
      %s179 = sadd.s32 %s178, 1
      %s180 = scalar_select %p177, %s178, %s179
      %p183 = pneg %p177
      %p184 = scmp.eq.s32.totalorder %s16, 1
      %p185 = por %p183, %p184
      %p186 = scmp.ne.s32.totalorder %s178, %s181
      %p187 = scmp.eq.s32.totalorder %s16, 0
      %p188 = por %p186, %p187
      %p189 = scmp.ne.s32.totalorder %s178, %s181
      %p190 = scmp.eq.s32.totalorder %s21, 1
      %p191 = por %p189, %p190
      %p192 = scmp.ne.s32.totalorder %s181, %s182
      %p193 = scmp.eq.s32.totalorder %s21, 0
      %p194 = por %p192, %p193
      %p195 = scmp.ne.s32.totalorder %s181, %s182
      %p196 = scmp.eq.s32.totalorder %s22, 1
      %p197 = por %p195, %p196
      %p199 = scmp.ne.s32.totalorder %s182, %s198
      %p200 = scmp.eq.s32.totalorder %s22, 0
      %p201 = por %p199, %p200
      %p202 = scmp.le.s32.totalorder 1, %s16
      %p203 = scmp.lt.s32.totalorder %s16, 3
      %p204 = pnand %p202, %p203
      %p205 = pneg %p204
      // Predicated region
      $region9: #{tpu_custom_call.1} parent=5 // pred_check
        _
      $region10: #{tpu_custom_call.1} parent=5 // pred_check_branch
        %207 = sbr.rel (%p204) target = $region12
      $region11: #{tpu_custom_call.1} parent=5 // pred_region
        %s208 = ssub.s32 %s16, 1
        // Predicated region
        $region13: #{tpu_custom_call.1} parent=11 // pred_check
          %p209 = pneg %p63
        $region14: #{tpu_custom_call.1} parent=11 // pred_check_branch
          %211 = sbr.rel (%p209) target = $region16
        $region15: #{tpu_custom_call.1} parent=11 // pred_region
          _
        $region16: #{tpu_custom_call.1} parent=11 // pred_fallthru
          _
        // Predicated region
        $region17: #{tpu_custom_call.1} parent=11 // pred_check
          %p212 = pneg %p84
        $region18: #{tpu_custom_call.1} parent=11 // pred_check_branch
          %214 = sbr.rel (%p212) target = $region20
        $region19: #{tpu_custom_call.1} parent=11 // pred_region
          _
        $region20: #{tpu_custom_call.1} parent=11 // pred_fallthru
          _
        // Predicated region
        $region21: #{tpu_custom_call.1} parent=11 // pred_check
          %p215 = pneg %p105
        $region22: #{tpu_custom_call.1} parent=11 // pred_check_branch
          %217 = sbr.rel (%p215) target = $region24
        $region23: #{tpu_custom_call.1} parent=11 // pred_region
          _
        $region24: #{tpu_custom_call.1} parent=11 // pred_fallthru
          _
        // Predicated region
        $region25: #{tpu_custom_call.1} parent=11 // pred_check
          %p218 = pneg %p126
        $region26: #{tpu_custom_call.1} parent=11 // pred_check_branch
          %220 = sbr.rel (%p218) target = $region28
        $region27: #{tpu_custom_call.1} parent=11 // pred_region
          _
        $region28: #{tpu_custom_call.1} parent=11 // pred_fallthru
          _
        // Predicated region
        $region29: #{tpu_custom_call.1} parent=11 // pred_check
          %p221 = pneg %p147
        $region30: #{tpu_custom_call.1} parent=11 // pred_check_branch
          %223 = sbr.rel (%p221) target = $region32
        $region31: #{tpu_custom_call.1} parent=11 // pred_region
          _
        $region32: #{tpu_custom_call.1} parent=11 // pred_fallthru
          _
        // Predicated region
        $region33: #{tpu_custom_call.1} parent=11 // pred_check
          %p224 = pneg %p168
        $region34: #{tpu_custom_call.1} parent=11 // pred_check_branch
          %226 = sbr.rel (%p224) target = $region36
        $region35: #{tpu_custom_call.1} parent=11 // pred_region
          _
        $region36: #{tpu_custom_call.1} parent=11 // pred_fallthru
          _
      $region12: #{tpu_custom_call.1} parent=5 // pred_fallthru
        _
      %p227 = scmp.lt.s32.totalorder %s16, 2
      // Predicated region
      $region37: #{tpu_custom_call.1} parent=5 // pred_check
        %p228 = pneg %p227
      $region38: #{tpu_custom_call.1} parent=5 // pred_check_branch
        %230 = sbr.rel (%p228) target = $region40
      $region39: #{tpu_custom_call.1} parent=5 // pred_region
        // Predicated region
        $region41: #{tpu_custom_call.1} parent=39 // pred_check
          %p231 = pneg %p36
        $region42: #{tpu_custom_call.1} parent=39 // pred_check_branch
          %233 = sbr.rel (%p231) target = $region44
        $region43: #{tpu_custom_call.1} parent=39 // pred_region
          %p234 = scmp.lt.s32.totalorder %s16, 1
          %s235 = scalar_select %p234, %s16, 1
          %s236 = smul.addr %s235, 2
          %s237 = smul.addr %s236, 4
          %s238 = scalar_lea.vmem %s0, %s237
        $region44: #{tpu_custom_call.1} parent=39 // pred_fallthru
          _
      $region40: #{tpu_custom_call.1} parent=5 // pred_fallthru
        _
      %p239 = scmp.le.s32.totalorder 1, %s16
      %p240 = scmp.lt.s32.totalorder %s16, 3
      %p241 = pnand %p239, %p240
      %p242 = pneg %p241
      // Predicated region
      $region45: #{tpu_custom_call.1} parent=5 // pred_check
        _
      $region46: #{tpu_custom_call.1} parent=5 // pred_check_branch
        %244 = sbr.rel (%p241) target = $region48
      $region47: #{tpu_custom_call.1} parent=5 // pred_region
        %s245 = ssub.s32 %s16, 1
        %p246 = scmp.lt.s32.totalorder %s21, 1
        %s247 = scalar_select %p246, %s21, 1
        %s248 = smul.addr %s247, 2
        %s249 = smul.addr %s248, 4
        %s250 = scalar_lea.vmem %s0, %s249
        %p251 = pneg %p42
        %p252 = pneg %p39
        %p253 = pneg %p63
        %p254 = pneg %p60
        %p255 = pneg %p84
        %p256 = pneg %p81
        %p257 = pneg %p105
        %p258 = pneg %p102
        %p259 = pneg %p126
        %p260 = pneg %p123
        %p261 = pneg %p147
        %p262 = pneg %p144
        %p263 = pneg %p168
        %p264 = pneg %p165
        %p265 = pneg %p194
        %p266 = pneg %p191
        %s267 = sand.u32 %s181, 1
        %s268 = scalar_lea.sflag [#allocation7], %s267
        %s269 = sand.u32 %s181, 1
        %s270 = smul.addr %s269, 16
        %s271 = scalar_lea.vmem [#allocation6], %s270
        %p272 = scmp.lt.s32.totalorder %s21, 1
        %s273 = scalar_select %p272, %s21, 1
        %s274 = smul.addr %s273, 2
        %s275 = smul.addr %s274, 4
        %s276 = scalar_lea.vmem %s0, %s275
        %v277 = vld [vmem:[%s1] sm:$0xff]
        %v278 = vld [vmem:[%s4] sm:$0xff]
        %v279 = vld [vmem:[%s2] sm:$0xff]
        %v280 = vld [vmem:[%s3] sm:$0xff]
        %v281 = vld [vmem:[%s5] sm:$0xff]
        %v282 = vld [vmem:[%s6] sm:$0xff]
        %v283 = vlaneseq
        %v284 = vand.u32 %v283, 127
        %v285 = vadd.s32 %v284, 128
        %vm286 = vcmp.lt.s32.totalorder %v284, 0
        %v287 = vsub.s32 0, %v284
        %v288 = vsel %vm286, %v287, %v284
        %v289 = vshrl.u32 %v288, 4
        %v290 = vand.u32 %v288, 15
        %v291 = vsub.s32 0, %v290
        %v292 = vsel %vm286, %v291, %v290
        %vm293 = vcmp.lt.s32.totalorder %v285, 0
        %v294 = vsub.s32 0, %v285
        %v295 = vsel %vm293, %v294, %v285
        %v296 = vshrl.u32 %v295, 4
        %v297 = vand.u32 %v295, 15
        %v298 = vsub.s32 0, %v297
        %v299 = vsel %vm293, %v298, %v297
        %vm300 = vcmp.ne.s32.totalorder %v292, 0
        %vm301 = vcmp.ne.s32.totalorder %v299, 0
        %vm302 = vcmp.lt.s32.totalorder %v292, 0
        %vm303 = vcmp.lt.s32.totalorder %v299, 0
        %vm304 = vmand %vm302, %vm300
        %vm305 = vmand %vm303, %vm301
        %v306 = vadd.s32 %v292, 16
        %v307 = vadd.s32 %v299, 16
        %v308 = vsel %vm304, %v306, %v292
        %v309 = vsel %vm305, %v307, %v299
        %vm310 = vcmp.ne.s32.totalorder %v308, 0
        %vm311 = vcmp.ne.s32.totalorder %v309, 0
        %vm312 = vcmp.ne.s32.totalorder %v308, 15
        %vm313 = vcmp.ne.s32.totalorder %v309, 15
        %314 = vst [vmem:[#allocation2] sm:$0xf] 0.0
        %315 = vst [vmem:[#allocation2 + $0xc] sm:$0xf] 0.0
        %316 = vst [vmem:[#allocation4] sm:$0xff] 0.0
        %317 = vst [vmem:[#allocation4 + $0x18] sm:$0xff] 0.0
        %v318 = vld [vmem:[%s276] sm:$0xff]
        %319 = vst [vmem:[#allocation2 + $0x4] sm:$0xff] %v318
        %v320 = vld [vmem:[#allocation2] sm:$0xff]
        %v321 = vld [vmem:[#allocation2 + $0x8] sm:$0xff]
        %v322 = vsel %vm310, 1, 0
        %v323 = vsel %vm311, 1, 0
        %vm324 = vcmp.eq.s32.totalorder %v322, 1
        %vm325 = vcmp.eq.s32.totalorder %v323, 1
        %v328 = vcombine.high %v320, %v320
        %329 = vrot.lane.b32.xlu0 %v320, 17
        %v330 = vpop.permute.xlu0 %329
        %331 = vrot.lane.b32.xlu0 %v328, 17
        %v332 = vpop.permute.xlu0 %331
        %333 = vrot.lane.b32.xlu0 %v321, 17
        %v334 = vpop.permute.xlu0 %333
        %vm335 = vcmask 138240
        %v336 = vsel %vm335, %v330, %v332
        %v337 = vsel %vm335, %v332, %v334
        %v340 = vsel %vm324, %v336, 0.0
        %v341 = vsel %vm325, %v337, 0.0
        %342 = vst [vmem:[#allocation3] sm:$0xf] %v340
        %343 = vst [vmem:[#allocation3 + $0x8] sm:$0xf] %v341
        %v344 = vcombine.low %v320, %v320
        %v345 = vcombine.low %v321, %v321
        %346 = vrot.lane.b32.xlu0 %v344, 16
        %v347 = vpop.permute.xlu0 %346
        %348 = vrot.lane.b32.xlu0 %v320, 16
        %v349 = vpop.permute.xlu0 %348
        %350 = vrot.lane.b32.xlu0 %v345, 16
        %v351 = vpop.permute.xlu0 %350
        %vm352 = vcmask 130048
        %v353 = vsel %vm352, %v347, %v349
        %v354 = vsel %vm352, %v349, %v351
        %357 = vst [vmem:[#allocation3] sm:$0xf0] %v353
        %358 = vst [vmem:[#allocation3 + $0x8] sm:$0xf0] %v354
        %v359 = vsel %vm312, 1, 0
        %v360 = vsel %vm313, 1, 0
        %vm361 = vcmp.eq.s32.totalorder %v359, 1
        %vm362 = vcmp.eq.s32.totalorder %v360, 1
        %363 = vrot.lane.b32.xlu0 %v320, 15
        %v364 = vpop.permute.xlu0 %363
        %365 = vrot.lane.b32.xlu0 %v328, 15
        %v366 = vpop.permute.xlu0 %365
        %367 = vrot.lane.b32.xlu0 %v321, 15
        %v368 = vpop.permute.xlu0 %367
        %vm369 = vcmask 121856
        %v370 = vsel %vm369, %v364, %v366
        %v371 = vsel %vm369, %v366, %v368
        %v374 = vsel %vm361, %v370, 0.0
        %v375 = vsel %vm362, %v371, 0.0
        %376 = vst [vmem:[#allocation3 + $0x10] sm:$0xf] %v374
        %377 = vst [vmem:[#allocation3 + $0x18] sm:$0xf] %v375
        %378 = vrot.lane.b32.xlu0 %v320, 1
        %v379 = vpop.permute.xlu0 %378
        %380 = vrot.lane.b32.xlu0 %v328, 1
        %v381 = vpop.permute.xlu0 %380
        %382 = vrot.lane.b32.xlu0 %v321, 1
        %v383 = vpop.permute.xlu0 %382
        %vm384 = vcmask 7168
        %v385 = vsel %vm384, %v379, %v381
        %v386 = vsel %vm384, %v381, %v383
        %v389 = vsel %vm324, %v385, 0.0
        %v390 = vsel %vm325, %v386, 0.0
        %v393 = vrot.slane %v389, 4
        %v394 = vrot.slane %v390, 4
        %397 = vst [vmem:[#allocation3 + $0x10] sm:$0xf0] %v393
        %398 = vst [vmem:[#allocation3 + $0x18] sm:$0xf0] %v394
        %400 = vst [vmem:[#allocation3 + $0x20] sm:$0xf] %v328
        %401 = vst [vmem:[#allocation3 + $0x28] sm:$0xf] %v321
        %v402 = vcombine.high %v321, %v321
        %403 = vrot.lane.b32.xlu0 %v328, 127
        %v404 = vpop.permute.xlu0 %403
        %405 = vrot.lane.b32.xlu0 %v321, 127
        %v406 = vpop.permute.xlu0 %405
        %407 = vrot.lane.b32.xlu0 %v402, 127
        %v408 = vpop.permute.xlu0 %407
        %vm409 = vcmask 1039360
        %v410 = vsel %vm409, %v404, %v406
        %v411 = vsel %vm409, %v406, %v408
        %v414 = vsel %vm361, %v410, 0.0
        %v415 = vsel %vm362, %v411, 0.0
        %v418 = vrot.slane %v414, 4
        %v419 = vrot.slane %v415, 4
        %422 = vst [vmem:[#allocation3 + $0x20] sm:$0xf0] %v418
        %423 = vst [vmem:[#allocation3 + $0x28] sm:$0xf0] %v419
        %424 = vrot.lane.b32.xlu0 %v328, 113
        %v425 = vpop.permute.xlu0 %424
        %426 = vrot.lane.b32.xlu0 %v321, 113
        %v427 = vpop.permute.xlu0 %426
        %428 = vrot.lane.b32.xlu0 %v402, 113
        %v429 = vpop.permute.xlu0 %428
        %vm430 = vcmask 924672
        %v431 = vsel %vm430, %v425, %v427
        %v432 = vsel %vm430, %v427, %v429
        %v435 = vsel %vm324, %v431, 0.0
        %v436 = vsel %vm325, %v432, 0.0
        %437 = vst [vmem:[#allocation3 + $0x30] sm:$0xf] %v435
        %438 = vst [vmem:[#allocation3 + $0x38] sm:$0xf] %v436
        %439 = vrot.lane.b32.xlu0 %v320, 112
        %v440 = vpop.permute.xlu0 %439
        %441 = vrot.lane.b32.xlu0 %v345, 112
        %v442 = vpop.permute.xlu0 %441
        %443 = vrot.lane.b32.xlu0 %v321, 112
        %v444 = vpop.permute.xlu0 %443
        %vm445 = vcmask 916480
        %v446 = vsel %vm445, %v440, %v442
        %v447 = vsel %vm445, %v442, %v444
        %450 = vst [vmem:[#allocation3 + $0x30] sm:$0xf0] %v446
        %451 = vst [vmem:[#allocation3 + $0x38] sm:$0xf0] %v447
        %452 = vrot.lane.b32.xlu0 %v328, 111
        %v453 = vpop.permute.xlu0 %452
        %454 = vrot.lane.b32.xlu0 %v321, 111
        %v455 = vpop.permute.xlu0 %454
        %456 = vrot.lane.b32.xlu0 %v402, 111
        %v457 = vpop.permute.xlu0 %456
        %vm458 = vcmask 908288
        %v459 = vsel %vm458, %v453, %v455
        %v460 = vsel %vm458, %v455, %v457
        %v463 = vsel %vm361, %v459, 0.0
        %v464 = vsel %vm362, %v460, 0.0
        %465 = vst [vmem:[#allocation3 + $0x40] sm:$0xf] %v463
        %466 = vst [vmem:[#allocation3 + $0x48] sm:$0xf] %v464
        %v467 = vld [vmem:[#allocation3] sm:$0xff]
        %v468 = vld [vmem:[#allocation3 + $0x8] sm:$0xff]
        %v469 = vld [vmem:[#allocation3 + $0x10] sm:$0xff]
        %v470 = vld [vmem:[#allocation3 + $0x18] sm:$0xff]
        %v471 = vld [vmem:[#allocation3 + $0x20] sm:$0xff]
        %v472 = vld [vmem:[#allocation3 + $0x28] sm:$0xff]
        %v473 = vld [vmem:[#allocation3 + $0x30] sm:$0xff]
        %v474 = vld [vmem:[#allocation3 + $0x38] sm:$0xff]
        %v475 = vld [vmem:[#allocation3 + $0x40] sm:$0xf]
        %v476 = vld [vmem:[#allocation3 + $0x48] sm:$0xf]
        %vm477 = vcmask 293888
        %v479 = vsel %vm477, %v277, 0
        %vm481 = vcmask 1043456
        %v483 = vsel %vm481, %v475, 0
        %v486 = vsel %vm481, %v476, 0
        %v488 = vand.u32 %v468, 4294901760
        %489 = vmatprep.subr.mxu0 %v488
        %v490 = vand.u32 %v467, 4294901760
        %491 = vmatpush1.msra.mxu0 %v490
        %v492 = vand.u32 %v470, 4294901760
        %493 = vmatprep.subr.mxu0 %v492
        %v494 = vand.u32 %v469, 4294901760
        %495 = vmatpush1.msra.mxu0 %v494
        %v496 = vand.u32 %v472, 4294901760
        %497 = vmatprep.subr.mxu0 %v496
        %v498 = vand.u32 %v471, 4294901760
        %499 = vmatpush1.msra.mxu0 %v498
        %v500 = vand.u32 %v474, 4294901760
        %501 = vmatprep.subr.mxu0 %v500
        %v502 = vand.u32 %v473, 4294901760
        %503 = vmatpush1.msra.mxu0 %v502
        %v504 = vand.u32 %v486, 4294901760
        %505 = vmatprep.subr.mxu0 %v504
        %v506 = vand.u32 %v483, 4294901760
        %507 = vmatpush1.msra.mxu0 %v506
        %508 = vmatprep.subr.mxu0 0.0
        %509 = vmatpush1.msra.mxu0 0.0
        %510 = vmatprep.subr.mxu0 0.0
        %511 = vmatpush1.msra.mxu0 0.0
        %512 = vmatprep.subr.mxu0 0.0
        %513 = vmatpush1.msra.mxu0 0.0
        %514 = vmatprep.subr.mxu0 0.0
        %515 = vmatpush1.msra.mxu0 0.0
        %516 = vmatprep.subr.mxu0 0.0
        %517 = vmatpush1.msra.mxu0 0.0
        %518 = vmatprep.subr.mxu0 0.0
        %519 = vmatpush1.msra.mxu0 0.0
        %520 = vmatprep.subr.mxu0 0.0
        %521 = vmatpush1.msra.mxu0 0.0
        %522 = vmatprep.subr.mxu0 0.0
        %523 = vmatpush1.msra.mxu0 0.0
        %524 = vmatprep.subr.mxu0 0.0
        %525 = vmatpush1.msra.mxu0 0.0
        %526 = vmatprep.subr.mxu0 0.0
        %527 = vmatpush1.msra.mxu0 0.0
        %528 = vmatprep.subr.mxu0 0.0
        %529 = vmatpush1.msra.mxu0 0.0
        %530 = vmatprep.subr.mxu0 0.0
        %531 = vmatpush1.msra.mxu0 0.0
        %532 = vmatprep.subr.mxu0 0.0
        %533 = vmatpush1.msra.mxu0 0.0
        %534 = vmatprep.subr.mxu0 0.0
        %535 = vmatpush1.msra.mxu0 0.0
        %536 = vmatprep.subr.mxu0 0.0
        %537 = vmatpush1.msra.mxu0 0.0
        %538 = vmatprep.subr.mxu0 0.0
        %539 = vmatpush1.msra.mxu0 0.0
        %540 = vmatprep.subr.mxu0 0.0
        %541 = vmatpush1.msra.mxu0 0.0
        %542 = vmatprep.subr.mxu0 0.0
        %543 = vmatpush1.msra.mxu0 0.0
        %544 = vmatprep.subr.mxu0 0.0
        %545 = vmatpush1.msra.mxu0 0.0
        %546 = vmatprep.subr.mxu0 0.0
        %547 = vmatpush1.msra.mxu0 0.0
        %548 = vmatprep.subr.mxu0 0.0
        %549 = vmatpush1.msra.mxu0 0.0
        %550 = vmatprep.subr.mxu0 0.0
        %551 = vmatpush1.msra.mxu0 0.0
        %552 = vmatprep.subr.mxu0 0.0
        %553 = vmatpush1.msra.mxu0 0.0
        %554 = vmatprep.subr.mxu0 0.0
        %555 = vmatpush1.msra.mxu0 0.0
        %556 = vmatprep.subr.mxu0 0.0
        %557 = vmatpush1.msra.mxu0 0.0
        %558 = vmatprep.subr.mxu0 0.0
        %559 = vmatpush1.msra.mxu0 0.0
        %560 = vmatprep.subr.mxu0 0.0
        %561 = vmatpush1.msra.mxu0 0.0
        %562 = vmatprep.mubr.f32.mxu0 0.0
        %v563 = vand.u32 %v479, 4294901760
        %v564 = vsub.f32 %v479, %v563
        %v565 = vand.u32 %v564, 4294901760
        %v566 = vsub.f32 %v564, %v565
        %v567 = vand.u32 %v566, 4294901760
        %568 = vmatmul.mubr.f32.gmra.mrb[0].mxu0 %v567
        %v569 = vpop.f32.mrb[0].mxu0
        %v570 = vadd.f32 0.0, %v569
        %v571 = vpop.f32.mrb[0].mxu0
        %v572 = vadd.f32 0.0, %v571
        %573 = vdwg.mxu0
        %v574 = vand.u32 %v468, 4294901760
        %v575 = vsub.f32 %v468, %v574
        %v576 = vand.u32 %v575, 4294901760
        %v577 = vsub.f32 %v575, %v576
        %v578 = vand.u32 %v577, 4294901760
        %579 = vmatprep.subr.mxu0 %v578
        %v580 = vand.u32 %v467, 4294901760
        %v581 = vsub.f32 %v467, %v580
        %v582 = vand.u32 %v581, 4294901760
        %v583 = vsub.f32 %v581, %v582
        %v584 = vand.u32 %v583, 4294901760
        %585 = vmatpush1.msra.mxu0 %v584
        %v586 = vand.u32 %v470, 4294901760
        %v587 = vsub.f32 %v470, %v586
        %v588 = vand.u32 %v587, 4294901760
        %v589 = vsub.f32 %v587, %v588
        %v590 = vand.u32 %v589, 4294901760
        %591 = vmatprep.subr.mxu0 %v590
        %v592 = vand.u32 %v469, 4294901760
        %v593 = vsub.f32 %v469, %v592
        %v594 = vand.u32 %v593, 4294901760
        %v595 = vsub.f32 %v593, %v594
        %v596 = vand.u32 %v595, 4294901760
        %597 = vmatpush1.msra.mxu0 %v596
        %v598 = vand.u32 %v472, 4294901760
        %v599 = vsub.f32 %v472, %v598
        %v600 = vand.u32 %v599, 4294901760
        %v601 = vsub.f32 %v599, %v600
        %v602 = vand.u32 %v601, 4294901760
        %603 = vmatprep.subr.mxu0 %v602
        %v604 = vand.u32 %v471, 4294901760
        %v605 = vsub.f32 %v471, %v604
        %v606 = vand.u32 %v605, 4294901760
        %v607 = vsub.f32 %v605, %v606
        %v608 = vand.u32 %v607, 4294901760
        %609 = vmatpush1.msra.mxu0 %v608
        %v610 = vand.u32 %v474, 4294901760
        %v611 = vsub.f32 %v474, %v610
        %v612 = vand.u32 %v611, 4294901760
        %v613 = vsub.f32 %v611, %v612
        %v614 = vand.u32 %v613, 4294901760
        %615 = vmatprep.subr.mxu0 %v614
        %v616 = vand.u32 %v473, 4294901760
        %v617 = vsub.f32 %v473, %v616
        %v618 = vand.u32 %v617, 4294901760
        %v619 = vsub.f32 %v617, %v618
        %v620 = vand.u32 %v619, 4294901760
        %621 = vmatpush1.msra.mxu0 %v620
        %v622 = vand.u32 %v486, 4294901760
        %v623 = vsub.f32 %v486, %v622
        %v624 = vand.u32 %v623, 4294901760
        %v625 = vsub.f32 %v623, %v624
        %v626 = vand.u32 %v625, 4294901760
        %627 = vmatprep.subr.mxu0 %v626
        %v628 = vand.u32 %v483, 4294901760
        %v629 = vsub.f32 %v483, %v628
        %v630 = vand.u32 %v629, 4294901760
        %v631 = vsub.f32 %v629, %v630
        %v632 = vand.u32 %v631, 4294901760
        %633 = vmatpush1.msra.mxu0 %v632
        %634 = vmatprep.subr.mxu0 0.0
        %635 = vmatpush1.msra.mxu0 0.0
        %636 = vmatprep.subr.mxu0 0.0
        %637 = vmatpush1.msra.mxu0 0.0
        %638 = vmatprep.subr.mxu0 0.0
        %639 = vmatpush1.msra.mxu0 0.0
        %640 = vmatprep.subr.mxu0 0.0
        %641 = vmatpush1.msra.mxu0 0.0
        %642 = vmatprep.subr.mxu0 0.0
        %643 = vmatpush1.msra.mxu0 0.0
        %644 = vmatprep.subr.mxu0 0.0
        %645 = vmatpush1.msra.mxu0 0.0
        %646 = vmatprep.subr.mxu0 0.0
        %647 = vmatpush1.msra.mxu0 0.0
        %648 = vmatprep.subr.mxu0 0.0
        %649 = vmatpush1.msra.mxu0 0.0
        %650 = vmatprep.subr.mxu0 0.0
        %651 = vmatpush1.msra.mxu0 0.0
        %652 = vmatprep.subr.mxu0 0.0
        %653 = vmatpush1.msra.mxu0 0.0
        %654 = vmatprep.subr.mxu0 0.0
        %655 = vmatpush1.msra.mxu0 0.0
        %656 = vmatprep.subr.mxu0 0.0
        %657 = vmatpush1.msra.mxu0 0.0
        %658 = vmatprep.subr.mxu0 0.0
        %659 = vmatpush1.msra.mxu0 0.0
        %660 = vmatprep.subr.mxu0 0.0
        %661 = vmatpush1.msra.mxu0 0.0
        %662 = vmatprep.subr.mxu0 0.0
        %663 = vmatpush1.msra.mxu0 0.0
        %664 = vmatprep.subr.mxu0 0.0
        %665 = vmatpush1.msra.mxu0 0.0
        %666 = vmatprep.subr.mxu0 0.0
        %667 = vmatpush1.msra.mxu0 0.0
        %668 = vmatprep.subr.mxu0 0.0
        %669 = vmatpush1.msra.mxu0 0.0
        %670 = vmatprep.subr.mxu0 0.0
        %671 = vmatpush1.msra.mxu0 0.0
        %672 = vmatprep.subr.mxu0 0.0
        %673 = vmatpush1.msra.mxu0 0.0
        %674 = vmatprep.subr.mxu0 0.0
        %675 = vmatpush1.msra.mxu0 0.0
        %676 = vmatprep.subr.mxu0 0.0
        %677 = vmatpush1.msra.mxu0 0.0
        %678 = vmatprep.subr.mxu0 0.0
        %679 = vmatpush1.msra.mxu0 0.0
        %680 = vmatprep.subr.mxu0 0.0
        %681 = vmatpush1.msra.mxu0 0.0
        %682 = vmatprep.subr.mxu0 0.0
        %683 = vmatpush1.msra.mxu0 0.0
        %684 = vmatprep.subr.mxu0 0.0
        %685 = vmatpush1.msra.mxu0 0.0
        %686 = vmatprep.subr.mxu0 0.0
        %687 = vmatpush1.msra.mxu0 0.0
        %688 = vmatprep.mubr.f32.mxu0 0.0
        %v689 = vand.u32 %v479, 4294901760
        %690 = vmatmul.mubr.f32.gmra.mrb[0].mxu0 %v689
        %v691 = vpop.f32.mrb[0].mxu0
        %v692 = vadd.f32 %v570, %v691
        %v693 = vpop.f32.mrb[0].mxu0
        %v694 = vadd.f32 %v572, %v693
        %695 = vdwg.mxu0
        %v696 = vand.u32 %v468, 4294901760
        %v697 = vsub.f32 %v468, %v696
        %698 = vmatprep.subr.mxu0 %v697
        %v699 = vand.u32 %v467, 4294901760
        %v700 = vsub.f32 %v467, %v699
        %701 = vmatpush1.msra.mxu0 %v700
        %v702 = vand.u32 %v470, 4294901760
        %v703 = vsub.f32 %v470, %v702
        %704 = vmatprep.subr.mxu0 %v703
        %v705 = vand.u32 %v469, 4294901760
        %v706 = vsub.f32 %v469, %v705
        %707 = vmatpush1.msra.mxu0 %v706
        %v708 = vand.u32 %v472, 4294901760
        %v709 = vsub.f32 %v472, %v708
        %710 = vmatprep.subr.mxu0 %v709
        %v711 = vand.u32 %v471, 4294901760
        %v712 = vsub.f32 %v471, %v711
        %713 = vmatpush1.msra.mxu0 %v712
        %v714 = vand.u32 %v474, 4294901760
        %v715 = vsub.f32 %v474, %v714
        %716 = vmatprep.subr.mxu0 %v715
        %v717 = vand.u32 %v473, 4294901760
        %v718 = vsub.f32 %v473, %v717
        %719 = vmatpush1.msra.mxu0 %v718
        %v720 = vand.u32 %v486, 4294901760
        %v721 = vsub.f32 %v486, %v720
        %722 = vmatprep.subr.mxu0 %v721
        %v723 = vand.u32 %v483, 4294901760
        %v724 = vsub.f32 %v483, %v723
        %725 = vmatpush1.msra.mxu0 %v724
        %726 = vmatprep.subr.mxu0 0.0
        %727 = vmatpush1.msra.mxu0 0.0
        %728 = vmatprep.subr.mxu0 0.0
        %729 = vmatpush1.msra.mxu0 0.0
        %730 = vmatprep.subr.mxu0 0.0
        %731 = vmatpush1.msra.mxu0 0.0
        %732 = vmatprep.subr.mxu0 0.0
        %733 = vmatpush1.msra.mxu0 0.0
        %734 = vmatprep.subr.mxu0 0.0
        %735 = vmatpush1.msra.mxu0 0.0
        %736 = vmatprep.subr.mxu0 0.0
        %737 = vmatpush1.msra.mxu0 0.0
        %738 = vmatprep.subr.mxu0 0.0
        %739 = vmatpush1.msra.mxu0 0.0
        %740 = vmatprep.subr.mxu0 0.0
        %741 = vmatpush1.msra.mxu0 0.0
        %742 = vmatprep.subr.mxu0 0.0
        %743 = vmatpush1.msra.mxu0 0.0
        %744 = vmatprep.subr.mxu0 0.0
        %745 = vmatpush1.msra.mxu0 0.0
        %746 = vmatprep.subr.mxu0 0.0
        %747 = vmatpush1.msra.mxu0 0.0
        %748 = vmatprep.subr.mxu0 0.0
        %749 = vmatpush1.msra.mxu0 0.0
        %750 = vmatprep.subr.mxu0 0.0
        %751 = vmatpush1.msra.mxu0 0.0
        %752 = vmatprep.subr.mxu0 0.0
        %753 = vmatpush1.msra.mxu0 0.0
        %754 = vmatprep.subr.mxu0 0.0
        %755 = vmatpush1.msra.mxu0 0.0
        %756 = vmatprep.subr.mxu0 0.0
        %757 = vmatpush1.msra.mxu0 0.0
        %758 = vmatprep.subr.mxu0 0.0
        %759 = vmatpush1.msra.mxu0 0.0
        %760 = vmatprep.subr.mxu0 0.0
        %761 = vmatpush1.msra.mxu0 0.0
        %762 = vmatprep.subr.mxu0 0.0
        %763 = vmatpush1.msra.mxu0 0.0
        %764 = vmatprep.subr.mxu0 0.0
        %765 = vmatpush1.msra.mxu0 0.0
        %766 = vmatprep.subr.mxu0 0.0
        %767 = vmatpush1.msra.mxu0 0.0
        %768 = vmatprep.subr.mxu0 0.0
        %769 = vmatpush1.msra.mxu0 0.0
        %770 = vmatprep.subr.mxu0 0.0
        %771 = vmatpush1.msra.mxu0 0.0
        %772 = vmatprep.subr.mxu0 0.0
        %773 = vmatpush1.msra.mxu0 0.0
        %774 = vmatprep.subr.mxu0 0.0
        %775 = vmatpush1.msra.mxu0 0.0
        %776 = vmatprep.subr.mxu0 0.0
        %777 = vmatpush1.msra.mxu0 0.0
        %778 = vmatprep.subr.mxu0 0.0
        %779 = vmatpush1.msra.mxu0 0.0
        %780 = vmatprep.mubr.f32.mxu0 0.0
        %v781 = vand.u32 %v479, 4294901760
        %v782 = vsub.f32 %v479, %v781
        %783 = vmatmul.mubr.f32.gmra.mrb[0].mxu0 %v782
        %v784 = vpop.f32.mrb[0].mxu0
        %v785 = vadd.f32 %v692, %v784
        %v786 = vpop.f32.mrb[0].mxu0
        %v787 = vadd.f32 %v694, %v786
        %788 = vdwg.mxu0
        %v789 = vand.u32 %v468, 4294901760
        %790 = vmatprep.subr.mxu0 %v789
        %v791 = vand.u32 %v467, 4294901760
        %792 = vmatpush1.msra.mxu0 %v791
        %v793 = vand.u32 %v470, 4294901760
        %794 = vmatprep.subr.mxu0 %v793
        %v795 = vand.u32 %v469, 4294901760
        %796 = vmatpush1.msra.mxu0 %v795
        %v797 = vand.u32 %v472, 4294901760
        %798 = vmatprep.subr.mxu0 %v797
        %v799 = vand.u32 %v471, 4294901760
        %800 = vmatpush1.msra.mxu0 %v799
        %v801 = vand.u32 %v474, 4294901760
        %802 = vmatprep.subr.mxu0 %v801
        %v803 = vand.u32 %v473, 4294901760
        %804 = vmatpush1.msra.mxu0 %v803
        %v805 = vand.u32 %v486, 4294901760
        %806 = vmatprep.subr.mxu0 %v805
        %v807 = vand.u32 %v483, 4294901760
        %808 = vmatpush1.msra.mxu0 %v807
        %809 = vmatprep.subr.mxu0 0.0
        %810 = vmatpush1.msra.mxu0 0.0
        %811 = vmatprep.subr.mxu0 0.0
        %812 = vmatpush1.msra.mxu0 0.0
        %813 = vmatprep.subr.mxu0 0.0
        %814 = vmatpush1.msra.mxu0 0.0
        %815 = vmatprep.subr.mxu0 0.0
        %816 = vmatpush1.msra.mxu0 0.0
        %817 = vmatprep.subr.mxu0 0.0
        %818 = vmatpush1.msra.mxu0 0.0
        %819 = vmatprep.subr.mxu0 0.0
        %820 = vmatpush1.msra.mxu0 0.0
        %821 = vmatprep.subr.mxu0 0.0
        %822 = vmatpush1.msra.mxu0 0.0
        %823 = vmatprep.subr.mxu0 0.0
        %824 = vmatpush1.msra.mxu0 0.0
        %825 = vmatprep.subr.mxu0 0.0
        %826 = vmatpush1.msra.mxu0 0.0
        %827 = vmatprep.subr.mxu0 0.0
        %828 = vmatpush1.msra.mxu0 0.0
        %829 = vmatprep.subr.mxu0 0.0
        %830 = vmatpush1.msra.mxu0 0.0
        %831 = vmatprep.subr.mxu0 0.0
        %832 = vmatpush1.msra.mxu0 0.0
        %833 = vmatprep.subr.mxu0 0.0
        %834 = vmatpush1.msra.mxu0 0.0
        %835 = vmatprep.subr.mxu0 0.0
        %836 = vmatpush1.msra.mxu0 0.0
        %837 = vmatprep.subr.mxu0 0.0
        %838 = vmatpush1.msra.mxu0 0.0
        %839 = vmatprep.subr.mxu0 0.0
        %840 = vmatpush1.msra.mxu0 0.0
        %841 = vmatprep.subr.mxu0 0.0
        %842 = vmatpush1.msra.mxu0 0.0
        %843 = vmatprep.subr.mxu0 0.0
        %844 = vmatpush1.msra.mxu0 0.0
        %845 = vmatprep.subr.mxu0 0.0
        %846 = vmatpush1.msra.mxu0 0.0
        %847 = vmatprep.subr.mxu0 0.0
        %848 = vmatpush1.msra.mxu0 0.0
        %849 = vmatprep.subr.mxu0 0.0
        %850 = vmatpush1.msra.mxu0 0.0
        %851 = vmatprep.subr.mxu0 0.0
        %852 = vmatpush1.msra.mxu0 0.0
        %853 = vmatprep.subr.mxu0 0.0
        %854 = vmatpush1.msra.mxu0 0.0
        %855 = vmatprep.subr.mxu0 0.0
        %856 = vmatpush1.msra.mxu0 0.0
        %857 = vmatprep.subr.mxu0 0.0
        %858 = vmatpush1.msra.mxu0 0.0
        %859 = vmatprep.subr.mxu0 0.0
        %860 = vmatpush1.msra.mxu0 0.0
        %861 = vmatprep.subr.mxu0 0.0
        %862 = vmatpush1.msra.mxu0 0.0
        %863 = vmatprep.mubr.f32.mxu0 0.0
        %v864 = vand.u32 %v479, 4294901760
        %v865 = vsub.f32 %v479, %v864
        %v866 = vand.u32 %v865, 4294901760
        %867 = vmatmul.mubr.f32.gmra.mrb[0].mxu0 %v866
        %v868 = vpop.f32.mrb[0].mxu0
        %v869 = vadd.f32 %v785, %v868
        %v870 = vpop.f32.mrb[0].mxu0
        %v871 = vadd.f32 %v787, %v870
        %872 = vdwg.mxu0
        %v873 = vand.u32 %v468, 4294901760
        %v874 = vsub.f32 %v468, %v873
        %v875 = vand.u32 %v874, 4294901760
        %876 = vmatprep.subr.mxu0 %v875
        %v877 = vand.u32 %v467, 4294901760
        %v878 = vsub.f32 %v467, %v877
        %v879 = vand.u32 %v878, 4294901760
        %880 = vmatpush1.msra.mxu0 %v879
        %v881 = vand.u32 %v470, 4294901760
        %v882 = vsub.f32 %v470, %v881
        %v883 = vand.u32 %v882, 4294901760
        %884 = vmatprep.subr.mxu0 %v883
        %v885 = vand.u32 %v469, 4294901760
        %v886 = vsub.f32 %v469, %v885
        %v887 = vand.u32 %v886, 4294901760
        %888 = vmatpush1.msra.mxu0 %v887
        %v889 = vand.u32 %v472, 4294901760
        %v890 = vsub.f32 %v472, %v889
        %v891 = vand.u32 %v890, 4294901760
        %892 = vmatprep.subr.mxu0 %v891
        %v893 = vand.u32 %v471, 4294901760
        %v894 = vsub.f32 %v471, %v893
        %v895 = vand.u32 %v894, 4294901760
        %896 = vmatpush1.msra.mxu0 %v895
        %v897 = vand.u32 %v474, 4294901760
        %v898 = vsub.f32 %v474, %v897
        %v899 = vand.u32 %v898, 4294901760
        %900 = vmatprep.subr.mxu0 %v899
        %v901 = vand.u32 %v473, 4294901760
        %v902 = vsub.f32 %v473, %v901
        %v903 = vand.u32 %v902, 4294901760
        %904 = vmatpush1.msra.mxu0 %v903
        %v905 = vand.u32 %v486, 4294901760
        %v906 = vsub.f32 %v486, %v905
        %v907 = vand.u32 %v906, 4294901760
        %908 = vmatprep.subr.mxu0 %v907
        %v909 = vand.u32 %v483, 4294901760
        %v910 = vsub.f32 %v483, %v909
        %v911 = vand.u32 %v910, 4294901760
        %912 = vmatpush1.msra.mxu0 %v911
        %913 = vmatprep.subr.mxu0 0.0
        %914 = vmatpush1.msra.mxu0 0.0
        %915 = vmatprep.subr.mxu0 0.0
        %916 = vmatpush1.msra.mxu0 0.0
        %917 = vmatprep.subr.mxu0 0.0
        %918 = vmatpush1.msra.mxu0 0.0
        %919 = vmatprep.subr.mxu0 0.0
        %920 = vmatpush1.msra.mxu0 0.0
        %921 = vmatprep.subr.mxu0 0.0
        %922 = vmatpush1.msra.mxu0 0.0
        %923 = vmatprep.subr.mxu0 0.0
        %924 = vmatpush1.msra.mxu0 0.0
        %925 = vmatprep.subr.mxu0 0.0
        %926 = vmatpush1.msra.mxu0 0.0
        %927 = vmatprep.subr.mxu0 0.0
        %928 = vmatpush1.msra.mxu0 0.0
        %929 = vmatprep.subr.mxu0 0.0
        %930 = vmatpush1.msra.mxu0 0.0
        %931 = vmatprep.subr.mxu0 0.0
        %932 = vmatpush1.msra.mxu0 0.0
        %933 = vmatprep.subr.mxu0 0.0
        %934 = vmatpush1.msra.mxu0 0.0
        %935 = vmatprep.subr.mxu0 0.0
        %936 = vmatpush1.msra.mxu0 0.0
        %937 = vmatprep.subr.mxu0 0.0
        %938 = vmatpush1.msra.mxu0 0.0
        %939 = vmatprep.subr.mxu0 0.0
        %940 = vmatpush1.msra.mxu0 0.0
        %941 = vmatprep.subr.mxu0 0.0
        %942 = vmatpush1.msra.mxu0 0.0
        %943 = vmatprep.subr.mxu0 0.0
        %944 = vmatpush1.msra.mxu0 0.0
        %945 = vmatprep.subr.mxu0 0.0
        %946 = vmatpush1.msra.mxu0 0.0
        %947 = vmatprep.subr.mxu0 0.0
        %948 = vmatpush1.msra.mxu0 0.0
        %949 = vmatprep.subr.mxu0 0.0
        %950 = vmatpush1.msra.mxu0 0.0
        %951 = vmatprep.subr.mxu0 0.0
        %952 = vmatpush1.msra.mxu0 0.0
        %953 = vmatprep.subr.mxu0 0.0
        %954 = vmatpush1.msra.mxu0 0.0
        %955 = vmatprep.subr.mxu0 0.0
        %956 = vmatpush1.msra.mxu0 0.0
        %957 = vmatprep.subr.mxu0 0.0
        %958 = vmatpush1.msra.mxu0 0.0
        %959 = vmatprep.subr.mxu0 0.0
        %960 = vmatpush1.msra.mxu0 0.0
        %961 = vmatprep.subr.mxu0 0.0
        %962 = vmatpush1.msra.mxu0 0.0
        %963 = vmatprep.subr.mxu0 0.0
        %964 = vmatpush1.msra.mxu0 0.0
        %965 = vmatprep.subr.mxu0 0.0
        %966 = vmatpush1.msra.mxu0 0.0
        %967 = vmatprep.mubr.f32.mxu0 0.0
        %v968 = vand.u32 %v479, 4294901760
        %969 = vmatmul.mubr.f32.gmra.mrb[0].mxu0 %v968
        %v970 = vpop.f32.mrb[0].mxu0
        %v971 = vadd.f32 %v869, %v970
        %v972 = vpop.f32.mrb[0].mxu0
        %v973 = vadd.f32 %v871, %v972
        %974 = vdwg.mxu0
        %v975 = vand.u32 %v468, 4294901760
        %976 = vmatprep.subr.mxu0 %v975
        %v977 = vand.u32 %v467, 4294901760
        %978 = vmatpush1.msra.mxu0 %v977
        %v979 = vand.u32 %v470, 4294901760
        %980 = vmatprep.subr.mxu0 %v979
        %v981 = vand.u32 %v469, 4294901760
        %982 = vmatpush1.msra.mxu0 %v981
        %v983 = vand.u32 %v472, 4294901760
        %984 = vmatprep.subr.mxu0 %v983
        %v985 = vand.u32 %v471, 4294901760
        %986 = vmatpush1.msra.mxu0 %v985
        %v987 = vand.u32 %v474, 4294901760
        %988 = vmatprep.subr.mxu0 %v987
        %v989 = vand.u32 %v473, 4294901760
        %990 = vmatpush1.msra.mxu0 %v989
        %v991 = vand.u32 %v486, 4294901760
        %992 = vmatprep.subr.mxu0 %v991
        %v993 = vand.u32 %v483, 4294901760
        %994 = vmatpush1.msra.mxu0 %v993
        %995 = vmatprep.subr.mxu0 0.0
        %996 = vmatpush1.msra.mxu0 0.0
        %997 = vmatprep.subr.mxu0 0.0
        %998 = vmatpush1.msra.mxu0 0.0
        %999 = vmatprep.subr.mxu0 0.0
        %1000 = vmatpush1.msra.mxu0 0.0
        %1001 = vmatprep.subr.mxu0 0.0
        %1002 = vmatpush1.msra.mxu0 0.0
        %1003 = vmatprep.subr.mxu0 0.0
        %1004 = vmatpush1.msra.mxu0 0.0
        %1005 = vmatprep.subr.mxu0 0.0
        %1006 = vmatpush1.msra.mxu0 0.0
        %1007 = vmatprep.subr.mxu0 0.0
        %1008 = vmatpush1.msra.mxu0 0.0
        %1009 = vmatprep.subr.mxu0 0.0
        %1010 = vmatpush1.msra.mxu0 0.0
        %1011 = vmatprep.subr.mxu0 0.0
        %1012 = vmatpush1.msra.mxu0 0.0
        %1013 = vmatprep.subr.mxu0 0.0
        %1014 = vmatpush1.msra.mxu0 0.0
        %1015 = vmatprep.subr.mxu0 0.0
        %1016 = vmatpush1.msra.mxu0 0.0
        %1017 = vmatprep.subr.mxu0 0.0
        %1018 = vmatpush1.msra.mxu0 0.0
        %1019 = vmatprep.subr.mxu0 0.0
        %1020 = vmatpush1.msra.mxu0 0.0
        %1021 = vmatprep.subr.mxu0 0.0
        %1022 = vmatpush1.msra.mxu0 0.0
        %1023 = vmatprep.subr.mxu0 0.0
        %1024 = vmatpush1.msra.mxu0 0.0
        %1025 = vmatprep.subr.mxu0 0.0
        %1026 = vmatpush1.msra.mxu0 0.0
        %1027 = vmatprep.subr.mxu0 0.0
        %1028 = vmatpush1.msra.mxu0 0.0
        %1029 = vmatprep.subr.mxu0 0.0
        %1030 = vmatpush1.msra.mxu0 0.0
        %1031 = vmatprep.subr.mxu0 0.0
        %1032 = vmatpush1.msra.mxu0 0.0
        %1033 = vmatprep.subr.mxu0 0.0
        %1034 = vmatpush1.msra.mxu0 0.0
        %1035 = vmatprep.subr.mxu0 0.0
        %1036 = vmatpush1.msra.mxu0 0.0
        %1037 = vmatprep.subr.mxu0 0.0
        %1038 = vmatpush1.msra.mxu0 0.0
        %1039 = vmatprep.subr.mxu0 0.0
        %1040 = vmatpush1.msra.mxu0 0.0
        %1041 = vmatprep.subr.mxu0 0.0
        %1042 = vmatpush1.msra.mxu0 0.0
        %1043 = vmatprep.subr.mxu0 0.0
        %1044 = vmatpush1.msra.mxu0 0.0
        %1045 = vmatprep.subr.mxu0 0.0
        %1046 = vmatpush1.msra.mxu0 0.0
        %1047 = vmatprep.subr.mxu0 0.0
        %1048 = vmatpush1.msra.mxu0 0.0
        %1049 = vmatprep.mubr.f32.mxu0 0.0
        %v1050 = vand.u32 %v479, 4294901760
        %1051 = vmatmul.mubr.f32.gmra.mrb[0].mxu0 %v1050
        %v1052 = vpop.f32.mrb[0].mxu0
        %v1053 = vadd.f32 %v971, %v1052
        %v1054 = vpop.f32.mrb[0].mxu0
        %v1055 = vadd.f32 %v973, %v1054
        %1056 = vdwg.mxu0
        %v1057 = vadd.f32 %v1053, %v1055
        %1058 = vadd.xlane.f32.xlu0 %v1057
        %v1059 = vpop.xlane.xlu0 %1058
        %v1060 = vmul.f32 %v1059, 0.00390625
        %v1061 = vmul.f32 %v1053, %v1053
        %v1062 = vmul.f32 %v1055, %v1055
        %v1063 = vadd.f32 %v1061, %v1062
        %1064 = vadd.xlane.f32.xlu0 %v1063
        %v1065 = vpop.xlane.xlu0 %1064
        %v1066 = vmul.f32 %v1065, 0.00390625
        %v1067 = vmul.f32 %v1060, %v1060
        %v1068 = vsub.f32 %v1066, %v1067
        %v1069 = vadd.f32 %v1068, 1e-05
        %v1070 = vrsqrt.pop %v1069
        %v1071 = vmul.f32 %v279, %v1070
        %1073 = vset.pattern.permute.xlu0 0
        %1074 = vperm.xlu0 %1073, %v1071
        %v1075 = vpop.permute.xlu0 %1074
        %v1077 = vmul.f32 %v1053, %v1075
        %v1078 = vmul.f32 %v1055, %v1075
        %v1079 = vmul.f32 %v1060, %v1071
        %v1080 = vsub.f32 %v280, %v1079
        %1082 = vset.pattern.permute.xlu0 0
        %1083 = vperm.xlu0 %1082, %v1080
        %v1084 = vpop.permute.xlu0 %1083
        %v1086 = vadd.f32 %v1077, %v1084
        %v1087 = vadd.f32 %v1078, %v1084
        %1088 = vst [vmem:[#allocation4 + $0x8] sm:$0xff] %v1086
        %1089 = vst [vmem:[#allocation4 + $0x10] sm:$0xff] %v1087
        %v1090 = vld [vmem:[#allocation4] sm:$0xff]
        %v1091 = vld [vmem:[#allocation4 + $0x8] sm:$0xff]
        %v1092 = vld [vmem:[#allocation4 + $0x10] sm:$0xff]
        %v1093 = vld [vmem:[#allocation4 + $0x18] sm:$0xff]
        %1097 = vrot.lane.b32.xlu0 %v1090, 17
        %v1098 = vpop.permute.xlu0 %1097
        %1099 = vrot.lane.b32.xlu0 %v1091, 17
        %v1100 = vpop.permute.xlu0 %1099
        %1101 = vrot.lane.b32.xlu0 %v1092, 17
        %v1102 = vpop.permute.xlu0 %1101
        %v1103 = vsel %vm335, %v1098, %v1100
        %v1104 = vsel %vm335, %v1100, %v1102
        %v1107 = vsel %vm324, %v1103, 0.0
        %v1108 = vsel %vm325, %v1104, 0.0
        %1109 = vst [vmem:[#allocation5] sm:$0xff] %v1107
        %1110 = vst [vmem:[#allocation5 + $0x8] sm:$0xff] %v1108
        %1111 = vrot.lane.b32.xlu0 %v1090, 16
        %v1112 = vpop.permute.xlu0 %1111
        %1113 = vrot.lane.b32.xlu0 %v1091, 16
        %v1114 = vpop.permute.xlu0 %1113
        %1115 = vrot.lane.b32.xlu0 %v1092, 16
        %v1116 = vpop.permute.xlu0 %1115
        %v1117 = vsel %vm352, %v1112, %v1114
        %v1118 = vsel %vm352, %v1114, %v1116
        %1121 = vst [vmem:[#allocation5 + $0x10] sm:$0xff] %v1117
        %1122 = vst [vmem:[#allocation5 + $0x18] sm:$0xff] %v1118
        %1123 = vrot.lane.b32.xlu0 %v1090, 15
        %v1124 = vpop.permute.xlu0 %1123
        %1125 = vrot.lane.b32.xlu0 %v1091, 15
        %v1126 = vpop.permute.xlu0 %1125
        %1127 = vrot.lane.b32.xlu0 %v1092, 15
        %v1128 = vpop.permute.xlu0 %1127
        %v1129 = vsel %vm369, %v1124, %v1126
        %v1130 = vsel %vm369, %v1126, %v1128
        %v1133 = vsel %vm361, %v1129, 0.0
        %v1134 = vsel %vm362, %v1130, 0.0
        %1135 = vst [vmem:[#allocation5 + $0x20] sm:$0xff] %v1133
        %1136 = vst [vmem:[#allocation5 + $0x28] sm:$0xff] %v1134
        %1137 = vrot.lane.b32.xlu0 %v1090, 1
        %v1138 = vpop.permute.xlu0 %1137
        %1139 = vrot.lane.b32.xlu0 %v1091, 1
        %v1140 = vpop.permute.xlu0 %1139
        %1141 = vrot.lane.b32.xlu0 %v1092, 1
        %v1142 = vpop.permute.xlu0 %1141
        %v1143 = vsel %vm384, %v1138, %v1140
        %v1144 = vsel %vm384, %v1140, %v1142
        %v1147 = vsel %vm324, %v1143, 0.0
        %v1148 = vsel %vm325, %v1144, 0.0
        %1149 = vst [vmem:[#allocation5 + $0x30] sm:$0xff] %v1147
        %1150 = vst [vmem:[#allocation5 + $0x38] sm:$0xff] %v1148
        %1151 = vst [vmem:[#allocation5 + $0x40] sm:$0xff] %v1091
        %1152 = vst [vmem:[#allocation5 + $0x48] sm:$0xff] %v1092
        %1154 = vrot.lane.b32.xlu0 %v1091, 127
        %v1155 = vpop.permute.xlu0 %1154
        %1156 = vrot.lane.b32.xlu0 %v1092, 127
        %v1157 = vpop.permute.xlu0 %1156
        %1158 = vrot.lane.b32.xlu0 %v1093, 127
        %v1159 = vpop.permute.xlu0 %1158
        %v1160 = vsel %vm409, %v1155, %v1157
        %v1161 = vsel %vm409, %v1157, %v1159
        %v1164 = vsel %vm361, %v1160, 0.0
        %v1165 = vsel %vm362, %v1161, 0.0
        %1166 = vst [vmem:[#allocation5 + $0x50] sm:$0xff] %v1164
        %1167 = vst [vmem:[#allocation5 + $0x58] sm:$0xff] %v1165
        %1168 = vrot.lane.b32.xlu0 %v1091, 113
        %v1169 = vpop.permute.xlu0 %1168
        %1170 = vrot.lane.b32.xlu0 %v1092, 113
        %v1171 = vpop.permute.xlu0 %1170
        %1172 = vrot.lane.b32.xlu0 %v1093, 113
        %v1173 = vpop.permute.xlu0 %1172
        %v1174 = vsel %vm430, %v1169, %v1171
        %v1175 = vsel %vm430, %v1171, %v1173
        %v1178 = vsel %vm324, %v1174, 0.0
        %v1179 = vsel %vm325, %v1175, 0.0
        %1180 = vst [vmem:[#allocation5 + $0x60] sm:$0xff] %v1178
        %1181 = vst [vmem:[#allocation5 + $0x68] sm:$0xff] %v1179
        %1182 = vrot.lane.b32.xlu0 %v1091, 112
        %v1183 = vpop.permute.xlu0 %1182
        %1184 = vrot.lane.b32.xlu0 %v1092, 112
        %v1185 = vpop.permute.xlu0 %1184
        %1186 = vrot.lane.b32.xlu0 %v1093, 112
        %v1187 = vpop.permute.xlu0 %1186
        %v1188 = vsel %vm445, %v1183, %v1185
        %v1189 = vsel %vm445, %v1185, %v1187
        %1192 = vst [vmem:[#allocation5 + $0x70] sm:$0xff] %v1188
        %1193 = vst [vmem:[#allocation5 + $0x78] sm:$0xff] %v1189
        %1194 = vrot.lane.b32.xlu0 %v1091, 111
        %v1195 = vpop.permute.xlu0 %1194
        %1196 = vrot.lane.b32.xlu0 %v1092, 111
        %v1197 = vpop.permute.xlu0 %1196
        %1198 = vrot.lane.b32.xlu0 %v1093, 111
        %v1199 = vpop.permute.xlu0 %1198
        %v1200 = vsel %vm458, %v1195, %v1197
        %v1201 = vsel %vm458, %v1197, %v1199
        %v1204 = vsel %vm361, %v1200, 0.0
        %v1205 = vsel %vm362, %v1201, 0.0
        %1206 = vst [vmem:[#allocation5 + $0x80] sm:$0xff] %v1204
        %1207 = vst [vmem:[#allocation5 + $0x88] sm:$0xff] %v1205
        %v1208 = vld [vmem:[#allocation5] sm:$0xff]
        %v1209 = vld [vmem:[#allocation5 + $0x8] sm:$0xff]
        %v1210 = vld [vmem:[#allocation5 + $0x10] sm:$0xff]
        %v1211 = vld [vmem:[#allocation5 + $0x18] sm:$0xff]
        %v1212 = vld [vmem:[#allocation5 + $0x20] sm:$0xff]
        %v1213 = vld [vmem:[#allocation5 + $0x28] sm:$0xff]
        %v1214 = vld [vmem:[#allocation5 + $0x30] sm:$0xff]
        %v1215 = vld [vmem:[#allocation5 + $0x38] sm:$0xff]
        %v1216 = vld [vmem:[#allocation5 + $0x40] sm:$0xff]
        %v1217 = vld [vmem:[#allocation5 + $0x48] sm:$0xff]
        %v1218 = vld [vmem:[#allocation5 + $0x50] sm:$0xff]
        %v1219 = vld [vmem:[#allocation5 + $0x58] sm:$0xff]
        %v1220 = vld [vmem:[#allocation5 + $0x60] sm:$0xff]
        %v1221 = vld [vmem:[#allocation5 + $0x68] sm:$0xff]
        %v1222 = vld [vmem:[#allocation5 + $0x70] sm:$0xff]
        %v1223 = vld [vmem:[#allocation5 + $0x78] sm:$0xff]
        %v1224 = vld [vmem:[#allocation5 + $0x80] sm:$0xff]
        %v1225 = vld [vmem:[#allocation5 + $0x88] sm:$0xff]
        %vm1226 = vcmask 588800
        %v1228 = vsel %vm1226, %v278, 0
        %v1230 = vand.u32 %v1209, 4294901760
        %1231 = vmatprep.subr.mxu0 %v1230
        %v1232 = vand.u32 %v1208, 4294901760
        %1233 = vmatpush1.msra.mxu0 %v1232
        %v1234 = vand.u32 %v1211, 4294901760
        %1235 = vmatprep.subr.mxu0 %v1234
        %v1236 = vand.u32 %v1210, 4294901760
        %1237 = vmatpush1.msra.mxu0 %v1236
        %v1238 = vand.u32 %v1213, 4294901760
        %1239 = vmatprep.subr.mxu0 %v1238
        %v1240 = vand.u32 %v1212, 4294901760
        %1241 = vmatpush1.msra.mxu0 %v1240
        %v1242 = vand.u32 %v1215, 4294901760
        %1243 = vmatprep.subr.mxu0 %v1242
        %v1244 = vand.u32 %v1214, 4294901760
        %1245 = vmatpush1.msra.mxu0 %v1244
        %v1246 = vand.u32 %v1217, 4294901760
        %1247 = vmatprep.subr.mxu0 %v1246
        %v1248 = vand.u32 %v1216, 4294901760
        %1249 = vmatpush1.msra.mxu0 %v1248
        %v1250 = vand.u32 %v1219, 4294901760
        %1251 = vmatprep.subr.mxu0 %v1250
        %v1252 = vand.u32 %v1218, 4294901760
        %1253 = vmatpush1.msra.mxu0 %v1252
        %v1254 = vand.u32 %v1221, 4294901760
        %1255 = vmatprep.subr.mxu0 %v1254
        %v1256 = vand.u32 %v1220, 4294901760
        %1257 = vmatpush1.msra.mxu0 %v1256
        %v1258 = vand.u32 %v1223, 4294901760
        %1259 = vmatprep.subr.mxu0 %v1258
        %v1260 = vand.u32 %v1222, 4294901760
        %1261 = vmatpush1.msra.mxu0 %v1260
        %v1262 = vand.u32 %v1225, 4294901760
        %1263 = vmatprep.subr.mxu0 %v1262
        %v1264 = vand.u32 %v1224, 4294901760
        %1265 = vmatpush1.msra.mxu0 %v1264
        %1266 = vmatprep.subr.mxu0 0.0
        %1267 = vmatpush1.msra.mxu0 0.0
        %1268 = vmatprep.subr.mxu0 0.0
        %1269 = vmatpush1.msra.mxu0 0.0
        %1270 = vmatprep.subr.mxu0 0.0
        %1271 = vmatpush1.msra.mxu0 0.0
        %1272 = vmatprep.subr.mxu0 0.0
        %1273 = vmatpush1.msra.mxu0 0.0
        %1274 = vmatprep.subr.mxu0 0.0
        %1275 = vmatpush1.msra.mxu0 0.0
        %1276 = vmatprep.subr.mxu0 0.0
        %1277 = vmatpush1.msra.mxu0 0.0
        %1278 = vmatprep.subr.mxu0 0.0
        %1279 = vmatpush1.msra.mxu0 0.0
        %1280 = vmatprep.subr.mxu0 0.0
        %1281 = vmatpush1.msra.mxu0 0.0
        %1282 = vmatprep.subr.mxu0 0.0
        %1283 = vmatpush1.msra.mxu0 0.0
        %1284 = vmatprep.subr.mxu0 0.0
        %1285 = vmatpush1.msra.mxu0 0.0
        %1286 = vmatprep.subr.mxu0 0.0
        %1287 = vmatpush1.msra.mxu0 0.0
        %1288 = vmatprep.subr.mxu0 0.0
        %1289 = vmatpush1.msra.mxu0 0.0
        %1290 = vmatprep.subr.mxu0 0.0
        %1291 = vmatpush1.msra.mxu0 0.0
        %1292 = vmatprep.subr.mxu0 0.0
        %1293 = vmatpush1.msra.mxu0 0.0
        %1294 = vmatprep.subr.mxu0 0.0
        %1295 = vmatpush1.msra.mxu0 0.0
        %1296 = vmatprep.subr.mxu0 0.0
        %1297 = vmatpush1.msra.mxu0 0.0
        %1298 = vmatprep.subr.mxu0 0.0
        %1299 = vmatpush1.msra.mxu0 0.0
        %1300 = vmatprep.subr.mxu0 0.0
        %1301 = vmatpush1.msra.mxu0 0.0
        %1302 = vmatprep.subr.mxu0 0.0
        %1303 = vmatpush1.msra.mxu0 0.0
        %1304 = vmatprep.subr.mxu0 0.0
        %1305 = vmatpush1.msra.mxu0 0.0
        %1306 = vmatprep.subr.mxu0 0.0
        %1307 = vmatpush1.msra.mxu0 0.0
        %1308 = vmatprep.subr.mxu0 0.0
        %1309 = vmatpush1.msra.mxu0 0.0
        %1310 = vmatprep.subr.mxu0 0.0
        %1311 = vmatpush1.msra.mxu0 0.0
        %1312 = vmatprep.mubr.f32.mxu0 0.0
        %v1313 = vand.u32 %v1228, 4294901760
        %v1314 = vsub.f32 %v1228, %v1313
        %v1315 = vand.u32 %v1314, 4294901760
        %v1316 = vsub.f32 %v1314, %v1315
        %v1317 = vand.u32 %v1316, 4294901760
        %1318 = vmatmul.mubr.f32.gmra.mrb[0].mxu0 %v1317
        %v1319 = vpop.f32.mrb[0].mxu0
        %v1320 = vadd.f32 0.0, %v1319
        %v1321 = vpop.f32.mrb[0].mxu0
        %v1322 = vadd.f32 0.0, %v1321
        %1323 = vdwg.mxu0
        %v1324 = vand.u32 %v1209, 4294901760
        %v1325 = vsub.f32 %v1209, %v1324
        %v1326 = vand.u32 %v1325, 4294901760
        %v1327 = vsub.f32 %v1325, %v1326
        %v1328 = vand.u32 %v1327, 4294901760
        %1329 = vmatprep.subr.mxu0 %v1328
        %v1330 = vand.u32 %v1208, 4294901760
        %v1331 = vsub.f32 %v1208, %v1330
        %v1332 = vand.u32 %v1331, 4294901760
        %v1333 = vsub.f32 %v1331, %v1332
        %v1334 = vand.u32 %v1333, 4294901760
        %1335 = vmatpush1.msra.mxu0 %v1334
        %v1336 = vand.u32 %v1211, 4294901760
        %v1337 = vsub.f32 %v1211, %v1336
        %v1338 = vand.u32 %v1337, 4294901760
        %v1339 = vsub.f32 %v1337, %v1338
        %v1340 = vand.u32 %v1339, 4294901760
        %1341 = vmatprep.subr.mxu0 %v1340
        %v1342 = vand.u32 %v1210, 4294901760
        %v1343 = vsub.f32 %v1210, %v1342
        %v1344 = vand.u32 %v1343, 4294901760
        %v1345 = vsub.f32 %v1343, %v1344
        %v1346 = vand.u32 %v1345, 4294901760
        %1347 = vmatpush1.msra.mxu0 %v1346
        %v1348 = vand.u32 %v1213, 4294901760
        %v1349 = vsub.f32 %v1213, %v1348
        %v1350 = vand.u32 %v1349, 4294901760
        %v1351 = vsub.f32 %v1349, %v1350
        %v1352 = vand.u32 %v1351, 4294901760
        %1353 = vmatprep.subr.mxu0 %v1352
        %v1354 = vand.u32 %v1212, 4294901760
        %v1355 = vsub.f32 %v1212, %v1354
        %v1356 = vand.u32 %v1355, 4294901760
        %v1357 = vsub.f32 %v1355, %v1356
        %v1358 = vand.u32 %v1357, 4294901760
        %1359 = vmatpush1.msra.mxu0 %v1358
        %v1360 = vand.u32 %v1215, 4294901760
        %v1361 = vsub.f32 %v1215, %v1360
        %v1362 = vand.u32 %v1361, 4294901760
        %v1363 = vsub.f32 %v1361, %v1362
        %v1364 = vand.u32 %v1363, 4294901760
        %1365 = vmatprep.subr.mxu0 %v1364
        %v1366 = vand.u32 %v1214, 4294901760
        %v1367 = vsub.f32 %v1214, %v1366
        %v1368 = vand.u32 %v1367, 4294901760
        %v1369 = vsub.f32 %v1367, %v1368
        %v1370 = vand.u32 %v1369, 4294901760
        %1371 = vmatpush1.msra.mxu0 %v1370
        %v1372 = vand.u32 %v1217, 4294901760
        %v1373 = vsub.f32 %v1217, %v1372
        %v1374 = vand.u32 %v1373, 4294901760
        %v1375 = vsub.f32 %v1373, %v1374
        %v1376 = vand.u32 %v1375, 4294901760
        %1377 = vmatprep.subr.mxu0 %v1376
        %v1378 = vand.u32 %v1216, 4294901760
        %v1379 = vsub.f32 %v1216, %v1378
        %v1380 = vand.u32 %v1379, 4294901760
        %v1381 = vsub.f32 %v1379, %v1380
        %v1382 = vand.u32 %v1381, 4294901760
        %1383 = vmatpush1.msra.mxu0 %v1382
        %v1384 = vand.u32 %v1219, 4294901760
        %v1385 = vsub.f32 %v1219, %v1384
        %v1386 = vand.u32 %v1385, 4294901760
        %v1387 = vsub.f32 %v1385, %v1386
        %v1388 = vand.u32 %v1387, 4294901760
        %1389 = vmatprep.subr.mxu0 %v1388
        %v1390 = vand.u32 %v1218, 4294901760
        %v1391 = vsub.f32 %v1218, %v1390
        %v1392 = vand.u32 %v1391, 4294901760
        %v1393 = vsub.f32 %v1391, %v1392
        %v1394 = vand.u32 %v1393, 4294901760
        %1395 = vmatpush1.msra.mxu0 %v1394
        %v1396 = vand.u32 %v1221, 4294901760
        %v1397 = vsub.f32 %v1221, %v1396
        %v1398 = vand.u32 %v1397, 4294901760
        %v1399 = vsub.f32 %v1397, %v1398
        %v1400 = vand.u32 %v1399, 4294901760
        %1401 = vmatprep.subr.mxu0 %v1400
        %v1402 = vand.u32 %v1220, 4294901760
        %v1403 = vsub.f32 %v1220, %v1402
        %v1404 = vand.u32 %v1403, 4294901760
        %v1405 = vsub.f32 %v1403, %v1404
        %v1406 = vand.u32 %v1405, 4294901760
        %1407 = vmatpush1.msra.mxu0 %v1406
        %v1408 = vand.u32 %v1223, 4294901760
        %v1409 = vsub.f32 %v1223, %v1408
        %v1410 = vand.u32 %v1409, 4294901760
        %v1411 = vsub.f32 %v1409, %v1410
        %v1412 = vand.u32 %v1411, 4294901760
        %1413 = vmatprep.subr.mxu0 %v1412
        %v1414 = vand.u32 %v1222, 4294901760
        %v1415 = vsub.f32 %v1222, %v1414
        %v1416 = vand.u32 %v1415, 4294901760
        %v1417 = vsub.f32 %v1415, %v1416
        %v1418 = vand.u32 %v1417, 4294901760
        %1419 = vmatpush1.msra.mxu0 %v1418
        %v1420 = vand.u32 %v1225, 4294901760
        %v1421 = vsub.f32 %v1225, %v1420
        %v1422 = vand.u32 %v1421, 4294901760
        %v1423 = vsub.f32 %v1421, %v1422
        %v1424 = vand.u32 %v1423, 4294901760
        %1425 = vmatprep.subr.mxu0 %v1424
        %v1426 = vand.u32 %v1224, 4294901760
        %v1427 = vsub.f32 %v1224, %v1426
        %v1428 = vand.u32 %v1427, 4294901760
        %v1429 = vsub.f32 %v1427, %v1428
        %v1430 = vand.u32 %v1429, 4294901760
        %1431 = vmatpush1.msra.mxu0 %v1430
        %1432 = vmatprep.subr.mxu0 0.0
        %1433 = vmatpush1.msra.mxu0 0.0
        %1434 = vmatprep.subr.mxu0 0.0
        %1435 = vmatpush1.msra.mxu0 0.0
        %1436 = vmatprep.subr.mxu0 0.0
        %1437 = vmatpush1.msra.mxu0 0.0
        %1438 = vmatprep.subr.mxu0 0.0
        %1439 = vmatpush1.msra.mxu0 0.0
        %1440 = vmatprep.subr.mxu0 0.0
        %1441 = vmatpush1.msra.mxu0 0.0
        %1442 = vmatprep.subr.mxu0 0.0
        %1443 = vmatpush1.msra.mxu0 0.0
        %1444 = vmatprep.subr.mxu0 0.0
        %1445 = vmatpush1.msra.mxu0 0.0
        %1446 = vmatprep.subr.mxu0 0.0
        %1447 = vmatpush1.msra.mxu0 0.0
        %1448 = vmatprep.subr.mxu0 0.0
        %1449 = vmatpush1.msra.mxu0 0.0
        %1450 = vmatprep.subr.mxu0 0.0
        %1451 = vmatpush1.msra.mxu0 0.0
        %1452 = vmatprep.subr.mxu0 0.0
        %1453 = vmatpush1.msra.mxu0 0.0
        %1454 = vmatprep.subr.mxu0 0.0
        %1455 = vmatpush1.msra.mxu0 0.0
        %1456 = vmatprep.subr.mxu0 0.0
        %1457 = vmatpush1.msra.mxu0 0.0
        %1458 = vmatprep.subr.mxu0 0.0
        %1459 = vmatpush1.msra.mxu0 0.0
        %1460 = vmatprep.subr.mxu0 0.0
        %1461 = vmatpush1.msra.mxu0 0.0
        %1462 = vmatprep.subr.mxu0 0.0
        %1463 = vmatpush1.msra.mxu0 0.0
        %1464 = vmatprep.subr.mxu0 0.0
        %1465 = vmatpush1.msra.mxu0 0.0
        %1466 = vmatprep.subr.mxu0 0.0
        %1467 = vmatpush1.msra.mxu0 0.0
        %1468 = vmatprep.subr.mxu0 0.0
        %1469 = vmatpush1.msra.mxu0 0.0
        %1470 = vmatprep.subr.mxu0 0.0
        %1471 = vmatpush1.msra.mxu0 0.0
        %1472 = vmatprep.subr.mxu0 0.0
        %1473 = vmatpush1.msra.mxu0 0.0
        %1474 = vmatprep.subr.mxu0 0.0
        %1475 = vmatpush1.msra.mxu0 0.0
        %1476 = vmatprep.subr.mxu0 0.0
        %1477 = vmatpush1.msra.mxu0 0.0
        %1478 = vmatprep.mubr.f32.mxu0 0.0
        %v1479 = vand.u32 %v1228, 4294901760
        %1480 = vmatmul.mubr.f32.gmra.mrb[0].mxu0 %v1479
        %v1481 = vpop.f32.mrb[0].mxu0
        %v1482 = vadd.f32 %v1320, %v1481
        %v1483 = vpop.f32.mrb[0].mxu0
        %v1484 = vadd.f32 %v1322, %v1483
        %1485 = vdwg.mxu0
        %v1486 = vand.u32 %v1209, 4294901760
        %v1487 = vsub.f32 %v1209, %v1486
        %1488 = vmatprep.subr.mxu0 %v1487
        %v1489 = vand.u32 %v1208, 4294901760
        %v1490 = vsub.f32 %v1208, %v1489
        %1491 = vmatpush1.msra.mxu0 %v1490
        %v1492 = vand.u32 %v1211, 4294901760
        %v1493 = vsub.f32 %v1211, %v1492
        %1494 = vmatprep.subr.mxu0 %v1493
        %v1495 = vand.u32 %v1210, 4294901760
        %v1496 = vsub.f32 %v1210, %v1495
        %1497 = vmatpush1.msra.mxu0 %v1496
        %v1498 = vand.u32 %v1213, 4294901760
        %v1499 = vsub.f32 %v1213, %v1498
        %1500 = vmatprep.subr.mxu0 %v1499
        %v1501 = vand.u32 %v1212, 4294901760
        %v1502 = vsub.f32 %v1212, %v1501
        %1503 = vmatpush1.msra.mxu0 %v1502
        %v1504 = vand.u32 %v1215, 4294901760
        %v1505 = vsub.f32 %v1215, %v1504
        %1506 = vmatprep.subr.mxu0 %v1505
        %v1507 = vand.u32 %v1214, 4294901760
        %v1508 = vsub.f32 %v1214, %v1507
        %1509 = vmatpush1.msra.mxu0 %v1508
        %v1510 = vand.u32 %v1217, 4294901760
        %v1511 = vsub.f32 %v1217, %v1510
        %1512 = vmatprep.subr.mxu0 %v1511
        %v1513 = vand.u32 %v1216, 4294901760
        %v1514 = vsub.f32 %v1216, %v1513
        %1515 = vmatpush1.msra.mxu0 %v1514
        %v1516 = vand.u32 %v1219, 4294901760
        %v1517 = vsub.f32 %v1219, %v1516
        %1518 = vmatprep.subr.mxu0 %v1517
        %v1519 = vand.u32 %v1218, 4294901760
        %v1520 = vsub.f32 %v1218, %v1519
        %1521 = vmatpush1.msra.mxu0 %v1520
        %v1522 = vand.u32 %v1221, 4294901760
        %v1523 = vsub.f32 %v1221, %v1522
        %1524 = vmatprep.subr.mxu0 %v1523
        %v1525 = vand.u32 %v1220, 4294901760
        %v1526 = vsub.f32 %v1220, %v1525
        %1527 = vmatpush1.msra.mxu0 %v1526
        %v1528 = vand.u32 %v1223, 4294901760
        %v1529 = vsub.f32 %v1223, %v1528
        %1530 = vmatprep.subr.mxu0 %v1529
        %v1531 = vand.u32 %v1222, 4294901760
        %v1532 = vsub.f32 %v1222, %v1531
        %1533 = vmatpush1.msra.mxu0 %v1532
        %v1534 = vand.u32 %v1225, 4294901760
        %v1535 = vsub.f32 %v1225, %v1534
        %1536 = vmatprep.subr.mxu0 %v1535
        %v1537 = vand.u32 %v1224, 4294901760
        %v1538 = vsub.f32 %v1224, %v1537
        %1539 = vmatpush1.msra.mxu0 %v1538
        %1540 = vmatprep.subr.mxu0 0.0
        %1541 = vmatpush1.msra.mxu0 0.0
        %1542 = vmatprep.subr.mxu0 0.0
        %1543 = vmatpush1.msra.mxu0 0.0
        %1544 = vmatprep.subr.mxu0 0.0
        %1545 = vmatpush1.msra.mxu0 0.0
        %1546 = vmatprep.subr.mxu0 0.0
        %1547 = vmatpush1.msra.mxu0 0.0
        %1548 = vmatprep.subr.mxu0 0.0
        %1549 = vmatpush1.msra.mxu0 0.0
        %1550 = vmatprep.subr.mxu0 0.0
        %1551 = vmatpush1.msra.mxu0 0.0
        %1552 = vmatprep.subr.mxu0 0.0
        %1553 = vmatpush1.msra.mxu0 0.0
        %1554 = vmatprep.subr.mxu0 0.0
        %1555 = vmatpush1.msra.mxu0 0.0
        %1556 = vmatprep.subr.mxu0 0.0
        %1557 = vmatpush1.msra.mxu0 0.0
        %1558 = vmatprep.subr.mxu0 0.0
        %1559 = vmatpush1.msra.mxu0 0.0
        %1560 = vmatprep.subr.mxu0 0.0
        %1561 = vmatpush1.msra.mxu0 0.0
        %1562 = vmatprep.subr.mxu0 0.0
        %1563 = vmatpush1.msra.mxu0 0.0
        %1564 = vmatprep.subr.mxu0 0.0
        %1565 = vmatpush1.msra.mxu0 0.0
        %1566 = vmatprep.subr.mxu0 0.0
        %1567 = vmatpush1.msra.mxu0 0.0
        %1568 = vmatprep.subr.mxu0 0.0
        %1569 = vmatpush1.msra.mxu0 0.0
        %1570 = vmatprep.subr.mxu0 0.0
        %1571 = vmatpush1.msra.mxu0 0.0
        %1572 = vmatprep.subr.mxu0 0.0
        %1573 = vmatpush1.msra.mxu0 0.0
        %1574 = vmatprep.subr.mxu0 0.0
        %1575 = vmatpush1.msra.mxu0 0.0
        %1576 = vmatprep.subr.mxu0 0.0
        %1577 = vmatpush1.msra.mxu0 0.0
        %1578 = vmatprep.subr.mxu0 0.0
        %1579 = vmatpush1.msra.mxu0 0.0
        %1580 = vmatprep.subr.mxu0 0.0
        %1581 = vmatpush1.msra.mxu0 0.0
        %1582 = vmatprep.subr.mxu0 0.0
        %1583 = vmatpush1.msra.mxu0 0.0
        %1584 = vmatprep.subr.mxu0 0.0
        %1585 = vmatpush1.msra.mxu0 0.0
        %1586 = vmatprep.mubr.f32.mxu0 0.0
        %v1587 = vand.u32 %v1228, 4294901760
        %v1588 = vsub.f32 %v1228, %v1587
        %1589 = vmatmul.mubr.f32.gmra.mrb[0].mxu0 %v1588
        %v1590 = vpop.f32.mrb[0].mxu0
        %v1591 = vadd.f32 %v1482, %v1590
        %v1592 = vpop.f32.mrb[0].mxu0
        %v1593 = vadd.f32 %v1484, %v1592
        %1594 = vdwg.mxu0
        %v1595 = vand.u32 %v1209, 4294901760
        %1596 = vmatprep.subr.mxu0 %v1595
        %v1597 = vand.u32 %v1208, 4294901760
        %1598 = vmatpush1.msra.mxu0 %v1597
        %v1599 = vand.u32 %v1211, 4294901760
        %1600 = vmatprep.subr.mxu0 %v1599
        %v1601 = vand.u32 %v1210, 4294901760
        %1602 = vmatpush1.msra.mxu0 %v1601
        %v1603 = vand.u32 %v1213, 4294901760
        %1604 = vmatprep.subr.mxu0 %v1603
        %v1605 = vand.u32 %v1212, 4294901760
        %1606 = vmatpush1.msra.mxu0 %v1605
        %v1607 = vand.u32 %v1215, 4294901760
        %1608 = vmatprep.subr.mxu0 %v1607
        %v1609 = vand.u32 %v1214, 4294901760
        %1610 = vmatpush1.msra.mxu0 %v1609
        %v1611 = vand.u32 %v1217, 4294901760
        %1612 = vmatprep.subr.mxu0 %v1611
        %v1613 = vand.u32 %v1216, 4294901760
        %1614 = vmatpush1.msra.mxu0 %v1613
        %v1615 = vand.u32 %v1219, 4294901760
        %1616 = vmatprep.subr.mxu0 %v1615
        %v1617 = vand.u32 %v1218, 4294901760
        %1618 = vmatpush1.msra.mxu0 %v1617
        %v1619 = vand.u32 %v1221, 4294901760
        %1620 = vmatprep.subr.mxu0 %v1619
        %v1621 = vand.u32 %v1220, 4294901760
        %1622 = vmatpush1.msra.mxu0 %v1621
        %v1623 = vand.u32 %v1223, 4294901760
        %1624 = vmatprep.subr.mxu0 %v1623
        %v1625 = vand.u32 %v1222, 4294901760
        %1626 = vmatpush1.msra.mxu0 %v1625
        %v1627 = vand.u32 %v1225, 4294901760
        %1628 = vmatprep.subr.mxu0 %v1627
        %v1629 = vand.u32 %v1224, 4294901760
        %1630 = vmatpush1.msra.mxu0 %v1629
        %1631 = vmatprep.subr.mxu0 0.0
        %1632 = vmatpush1.msra.mxu0 0.0
        %1633 = vmatprep.subr.mxu0 0.0
        %1634 = vmatpush1.msra.mxu0 0.0
        %1635 = vmatprep.subr.mxu0 0.0
        %1636 = vmatpush1.msra.mxu0 0.0
        %1637 = vmatprep.subr.mxu0 0.0
        %1638 = vmatpush1.msra.mxu0 0.0
        %1639 = vmatprep.subr.mxu0 0.0
        %1640 = vmatpush1.msra.mxu0 0.0
        %1641 = vmatprep.subr.mxu0 0.0
        %1642 = vmatpush1.msra.mxu0 0.0
        %1643 = vmatprep.subr.mxu0 0.0
        %1644 = vmatpush1.msra.mxu0 0.0
        %1645 = vmatprep.subr.mxu0 0.0
        %1646 = vmatpush1.msra.mxu0 0.0
        %1647 = vmatprep.subr.mxu0 0.0
        %1648 = vmatpush1.msra.mxu0 0.0
        %1649 = vmatprep.subr.mxu0 0.0
        %1650 = vmatpush1.msra.mxu0 0.0
        %1651 = vmatprep.subr.mxu0 0.0
        %1652 = vmatpush1.msra.mxu0 0.0
        %1653 = vmatprep.subr.mxu0 0.0
        %1654 = vmatpush1.msra.mxu0 0.0
        %1655 = vmatprep.subr.mxu0 0.0
        %1656 = vmatpush1.msra.mxu0 0.0
        %1657 = vmatprep.subr.mxu0 0.0
        %1658 = vmatpush1.msra.mxu0 0.0
        %1659 = vmatprep.subr.mxu0 0.0
        %1660 = vmatpush1.msra.mxu0 0.0
        %1661 = vmatprep.subr.mxu0 0.0
        %1662 = vmatpush1.msra.mxu0 0.0
        %1663 = vmatprep.subr.mxu0 0.0
        %1664 = vmatpush1.msra.mxu0 0.0
        %1665 = vmatprep.subr.mxu0 0.0
        %1666 = vmatpush1.msra.mxu0 0.0
        %1667 = vmatprep.subr.mxu0 0.0
        %1668 = vmatpush1.msra.mxu0 0.0
        %1669 = vmatprep.subr.mxu0 0.0
        %1670 = vmatpush1.msra.mxu0 0.0
        %1671 = vmatprep.subr.mxu0 0.0
        %1672 = vmatpush1.msra.mxu0 0.0
        %1673 = vmatprep.subr.mxu0 0.0
        %1674 = vmatpush1.msra.mxu0 0.0
        %1675 = vmatprep.subr.mxu0 0.0
        %1676 = vmatpush1.msra.mxu0 0.0
        %1677 = vmatprep.mubr.f32.mxu0 0.0
        %v1678 = vand.u32 %v1228, 4294901760
        %v1679 = vsub.f32 %v1228, %v1678
        %v1680 = vand.u32 %v1679, 4294901760
        %1681 = vmatmul.mubr.f32.gmra.mrb[0].mxu0 %v1680
        %v1682 = vpop.f32.mrb[0].mxu0
        %v1683 = vadd.f32 %v1591, %v1682
        %v1684 = vpop.f32.mrb[0].mxu0
        %v1685 = vadd.f32 %v1593, %v1684
        %1686 = vdwg.mxu0
        %v1687 = vand.u32 %v1209, 4294901760
        %v1688 = vsub.f32 %v1209, %v1687
        %v1689 = vand.u32 %v1688, 4294901760
        %1690 = vmatprep.subr.mxu0 %v1689
        %v1691 = vand.u32 %v1208, 4294901760
        %v1692 = vsub.f32 %v1208, %v1691
        %v1693 = vand.u32 %v1692, 4294901760
        %1694 = vmatpush1.msra.mxu0 %v1693
        %v1695 = vand.u32 %v1211, 4294901760
        %v1696 = vsub.f32 %v1211, %v1695
        %v1697 = vand.u32 %v1696, 4294901760
        %1698 = vmatprep.subr.mxu0 %v1697
        %v1699 = vand.u32 %v1210, 4294901760
        %v1700 = vsub.f32 %v1210, %v1699
        %v1701 = vand.u32 %v1700, 4294901760
        %1702 = vmatpush1.msra.mxu0 %v1701
        %v1703 = vand.u32 %v1213, 4294901760
        %v1704 = vsub.f32 %v1213, %v1703
        %v1705 = vand.u32 %v1704, 4294901760
        %1706 = vmatprep.subr.mxu0 %v1705
        %v1707 = vand.u32 %v1212, 4294901760
        %v1708 = vsub.f32 %v1212, %v1707
        %v1709 = vand.u32 %v1708, 4294901760
        %1710 = vmatpush1.msra.mxu0 %v1709
        %v1711 = vand.u32 %v1215, 4294901760
        %v1712 = vsub.f32 %v1215, %v1711
        %v1713 = vand.u32 %v1712, 4294901760
        %1714 = vmatprep.subr.mxu0 %v1713
        %v1715 = vand.u32 %v1214, 4294901760
        %v1716 = vsub.f32 %v1214, %v1715
        %v1717 = vand.u32 %v1716, 4294901760
        %1718 = vmatpush1.msra.mxu0 %v1717
        %v1719 = vand.u32 %v1217, 4294901760
        %v1720 = vsub.f32 %v1217, %v1719
        %v1721 = vand.u32 %v1720, 4294901760
        %1722 = vmatprep.subr.mxu0 %v1721
        %v1723 = vand.u32 %v1216, 4294901760
        %v1724 = vsub.f32 %v1216, %v1723
        %v1725 = vand.u32 %v1724, 4294901760
        %1726 = vmatpush1.msra.mxu0 %v1725
        %v1727 = vand.u32 %v1219, 4294901760
        %v1728 = vsub.f32 %v1219, %v1727
        %v1729 = vand.u32 %v1728, 4294901760
        %1730 = vmatprep.subr.mxu0 %v1729
        %v1731 = vand.u32 %v1218, 4294901760
        %v1732 = vsub.f32 %v1218, %v1731
        %v1733 = vand.u32 %v1732, 4294901760
        %1734 = vmatpush1.msra.mxu0 %v1733
        %v1735 = vand.u32 %v1221, 4294901760
        %v1736 = vsub.f32 %v1221, %v1735
        %v1737 = vand.u32 %v1736, 4294901760
        %1738 = vmatprep.subr.mxu0 %v1737
        %v1739 = vand.u32 %v1220, 4294901760
        %v1740 = vsub.f32 %v1220, %v1739
        %v1741 = vand.u32 %v1740, 4294901760
        %1742 = vmatpush1.msra.mxu0 %v1741
        %v1743 = vand.u32 %v1223, 4294901760
        %v1744 = vsub.f32 %v1223, %v1743
        %v1745 = vand.u32 %v1744, 4294901760
        %1746 = vmatprep.subr.mxu0 %v1745
        %v1747 = vand.u32 %v1222, 4294901760
        %v1748 = vsub.f32 %v1222, %v1747
        %v1749 = vand.u32 %v1748, 4294901760
        %1750 = vmatpush1.msra.mxu0 %v1749
        %v1751 = vand.u32 %v1225, 4294901760
        %v1752 = vsub.f32 %v1225, %v1751
        %v1753 = vand.u32 %v1752, 4294901760
        %1754 = vmatprep.subr.mxu0 %v1753
        %v1755 = vand.u32 %v1224, 4294901760
        %v1756 = vsub.f32 %v1224, %v1755
        %v1757 = vand.u32 %v1756, 4294901760
        %1758 = vmatpush1.msra.mxu0 %v1757
        %1759 = vmatprep.subr.mxu0 0.0
        %1760 = vmatpush1.msra.mxu0 0.0
        %1761 = vmatprep.subr.mxu0 0.0
        %1762 = vmatpush1.msra.mxu0 0.0
        %1763 = vmatprep.subr.mxu0 0.0
        %1764 = vmatpush1.msra.mxu0 0.0
        %1765 = vmatprep.subr.mxu0 0.0
        %1766 = vmatpush1.msra.mxu0 0.0
        %1767 = vmatprep.subr.mxu0 0.0
        %1768 = vmatpush1.msra.mxu0 0.0
        %1769 = vmatprep.subr.mxu0 0.0
        %1770 = vmatpush1.msra.mxu0 0.0
        %1771 = vmatprep.subr.mxu0 0.0
        %1772 = vmatpush1.msra.mxu0 0.0
        %1773 = vmatprep.subr.mxu0 0.0
        %1774 = vmatpush1.msra.mxu0 0.0
        %1775 = vmatprep.subr.mxu0 0.0
        %1776 = vmatpush1.msra.mxu0 0.0
        %1777 = vmatprep.subr.mxu0 0.0
        %1778 = vmatpush1.msra.mxu0 0.0
        %1779 = vmatprep.subr.mxu0 0.0
        %1780 = vmatpush1.msra.mxu0 0.0
        %1781 = vmatprep.subr.mxu0 0.0
        %1782 = vmatpush1.msra.mxu0 0.0
        %1783 = vmatprep.subr.mxu0 0.0
        %1784 = vmatpush1.msra.mxu0 0.0
        %1785 = vmatprep.subr.mxu0 0.0
        %1786 = vmatpush1.msra.mxu0 0.0
        %1787 = vmatprep.subr.mxu0 0.0
        %1788 = vmatpush1.msra.mxu0 0.0
        %1789 = vmatprep.subr.mxu0 0.0
        %1790 = vmatpush1.msra.mxu0 0.0
        %1791 = vmatprep.subr.mxu0 0.0
        %1792 = vmatpush1.msra.mxu0 0.0
        %1793 = vmatprep.subr.mxu0 0.0
        %1794 = vmatpush1.msra.mxu0 0.0
        %1795 = vmatprep.subr.mxu0 0.0
        %1796 = vmatpush1.msra.mxu0 0.0
        %1797 = vmatprep.subr.mxu0 0.0
        %1798 = vmatpush1.msra.mxu0 0.0
        %1799 = vmatprep.subr.mxu0 0.0
        %1800 = vmatpush1.msra.mxu0 0.0
        %1801 = vmatprep.subr.mxu0 0.0
        %1802 = vmatpush1.msra.mxu0 0.0
        %1803 = vmatprep.subr.mxu0 0.0
        %1804 = vmatpush1.msra.mxu0 0.0
        %1805 = vmatprep.mubr.f32.mxu0 0.0
        %v1806 = vand.u32 %v1228, 4294901760
        %1807 = vmatmul.mubr.f32.gmra.mrb[0].mxu0 %v1806
        %v1808 = vpop.f32.mrb[0].mxu0
        %v1809 = vadd.f32 %v1683, %v1808
        %v1810 = vpop.f32.mrb[0].mxu0
        %v1811 = vadd.f32 %v1685, %v1810
        %1812 = vdwg.mxu0
        %v1813 = vand.u32 %v1209, 4294901760
        %1814 = vmatprep.subr.mxu0 %v1813
        %v1815 = vand.u32 %v1208, 4294901760
        %1816 = vmatpush1.msra.mxu0 %v1815
        %v1817 = vand.u32 %v1211, 4294901760
        %1818 = vmatprep.subr.mxu0 %v1817
        %v1819 = vand.u32 %v1210, 4294901760
        %1820 = vmatpush1.msra.mxu0 %v1819
        %v1821 = vand.u32 %v1213, 4294901760
        %1822 = vmatprep.subr.mxu0 %v1821
        %v1823 = vand.u32 %v1212, 4294901760
        %1824 = vmatpush1.msra.mxu0 %v1823
        %v1825 = vand.u32 %v1215, 4294901760
        %1826 = vmatprep.subr.mxu0 %v1825
        %v1827 = vand.u32 %v1214, 4294901760
        %1828 = vmatpush1.msra.mxu0 %v1827
        %v1829 = vand.u32 %v1217, 4294901760
        %1830 = vmatprep.subr.mxu0 %v1829
        %v1831 = vand.u32 %v1216, 4294901760
        %1832 = vmatpush1.msra.mxu0 %v1831
        %v1833 = vand.u32 %v1219, 4294901760
        %1834 = vmatprep.subr.mxu0 %v1833
        %v1835 = vand.u32 %v1218, 4294901760
        %1836 = vmatpush1.msra.mxu0 %v1835
        %v1837 = vand.u32 %v1221, 4294901760
        %1838 = vmatprep.subr.mxu0 %v1837
        %v1839 = vand.u32 %v1220, 4294901760
        %1840 = vmatpush1.msra.mxu0 %v1839
        %v1841 = vand.u32 %v1223, 4294901760
        %1842 = vmatprep.subr.mxu0 %v1841
        %v1843 = vand.u32 %v1222, 4294901760
        %1844 = vmatpush1.msra.mxu0 %v1843
        %v1845 = vand.u32 %v1225, 4294901760
        %1846 = vmatprep.subr.mxu0 %v1845
        %v1847 = vand.u32 %v1224, 4294901760
        %1848 = vmatpush1.msra.mxu0 %v1847
        %1849 = vmatprep.subr.mxu0 0.0
        %1850 = vmatpush1.msra.mxu0 0.0
        %1851 = vmatprep.subr.mxu0 0.0
        %1852 = vmatpush1.msra.mxu0 0.0
        %1853 = vmatprep.subr.mxu0 0.0
        %1854 = vmatpush1.msra.mxu0 0.0
        %1855 = vmatprep.subr.mxu0 0.0
        %1856 = vmatpush1.msra.mxu0 0.0
        %1857 = vmatprep.subr.mxu0 0.0
        %1858 = vmatpush1.msra.mxu0 0.0
        %1859 = vmatprep.subr.mxu0 0.0
        %1860 = vmatpush1.msra.mxu0 0.0
        %1861 = vmatprep.subr.mxu0 0.0
        %1862 = vmatpush1.msra.mxu0 0.0
        %1863 = vmatprep.subr.mxu0 0.0
        %1864 = vmatpush1.msra.mxu0 0.0
        %1865 = vmatprep.subr.mxu0 0.0
        %1866 = vmatpush1.msra.mxu0 0.0
        %1867 = vmatprep.subr.mxu0 0.0
        %1868 = vmatpush1.msra.mxu0 0.0
        %1869 = vmatprep.subr.mxu0 0.0
        %1870 = vmatpush1.msra.mxu0 0.0
        %1871 = vmatprep.subr.mxu0 0.0
        %1872 = vmatpush1.msra.mxu0 0.0
        %1873 = vmatprep.subr.mxu0 0.0
        %1874 = vmatpush1.msra.mxu0 0.0
        %1875 = vmatprep.subr.mxu0 0.0
        %1876 = vmatpush1.msra.mxu0 0.0
        %1877 = vmatprep.subr.mxu0 0.0
        %1878 = vmatpush1.msra.mxu0 0.0
        %1879 = vmatprep.subr.mxu0 0.0
        %1880 = vmatpush1.msra.mxu0 0.0
        %1881 = vmatprep.subr.mxu0 0.0
        %1882 = vmatpush1.msra.mxu0 0.0
        %1883 = vmatprep.subr.mxu0 0.0
        %1884 = vmatpush1.msra.mxu0 0.0
        %1885 = vmatprep.subr.mxu0 0.0
        %1886 = vmatpush1.msra.mxu0 0.0
        %1887 = vmatprep.subr.mxu0 0.0
        %1888 = vmatpush1.msra.mxu0 0.0
        %1889 = vmatprep.subr.mxu0 0.0
        %1890 = vmatpush1.msra.mxu0 0.0
        %1891 = vmatprep.subr.mxu0 0.0
        %1892 = vmatpush1.msra.mxu0 0.0
        %1893 = vmatprep.subr.mxu0 0.0
        %1894 = vmatpush1.msra.mxu0 0.0
        %1895 = vmatprep.mubr.f32.mxu0 0.0
        %v1896 = vand.u32 %v1228, 4294901760
        %1897 = vmatmul.mubr.f32.gmra.mrb[0].mxu0 %v1896
        %v1898 = vpop.f32.mrb[0].mxu0
        %v1899 = vadd.f32 %v1809, %v1898
        %v1900 = vpop.f32.mrb[0].mxu0
        %v1901 = vadd.f32 %v1811, %v1900
        %1902 = vdwg.mxu0
        %v1903 = vadd.f32 %v1899, %v1901
        %1904 = vadd.xlane.f32.xlu0 %v1903
        %v1905 = vpop.xlane.xlu0 %1904
        %v1906 = vmul.f32 %v1905, 0.00390625
        %v1907 = vmul.f32 %v1899, %v1899
        %v1908 = vmul.f32 %v1901, %v1901
        %v1909 = vadd.f32 %v1907, %v1908
        %1910 = vadd.xlane.f32.xlu0 %v1909
        %v1911 = vpop.xlane.xlu0 %1910
        %v1912 = vmul.f32 %v1911, 0.00390625
        %v1913 = vmul.f32 %v1906, %v1906
        %v1914 = vsub.f32 %v1912, %v1913
        %v1915 = vadd.f32 %v1914, 1e-05
        %v1916 = vrsqrt.pop %v1915
        %v1917 = vmul.f32 %v281, %v1916
        %1919 = vset.pattern.permute.xlu0 0
        %1920 = vperm.xlu0 %1919, %v1917
        %v1921 = vpop.permute.xlu0 %1920
        %v1923 = vmul.f32 %v1899, %v1921
        %v1924 = vmul.f32 %v1901, %v1921
        %v1925 = vmul.f32 %v1906, %v1917
        %v1926 = vsub.f32 %v282, %v1925
        %1928 = vset.pattern.permute.xlu0 0
        %1929 = vperm.xlu0 %1928, %v1926
        %v1930 = vpop.permute.xlu0 %1929
        %v1932 = vadd.f32 %v1923, %v1930
        %v1933 = vadd.f32 %v1924, %v1930
        %1934 = vst [vmem:[%s271] sm:$0xff] %v1932
        %1935 = vst [vmem:[%s271 + $0x8] sm:$0xff] %v1933
        %s1936 = sand.u32 %s181, 1
        %s1937 = scalar_lea.sflag [#allocation7], %s1936
        %s1938 = sand.u32 %s181, 1
        %s1939 = smul.addr %s1938, 16
        %s1940 = scalar_lea.vmem [#allocation6], %s1939
        // Predicated region
        $region49: #{tpu_custom_call.1} parent=47 // pred_check
          %p1941 = pneg %p191
        $region50: #{tpu_custom_call.1} parent=47 // pred_check_branch
          %1943 = sbr.rel (%p1941) target = $region52
        $region51: #{tpu_custom_call.1} parent=47 // pred_region
          %s1945 = ssub.s32 256, 256
          %1946 = vsyncadd %s1937, %s1945
          %s1947 = smul.addr %s21, 2
          %s1948 = smul.addr %s1947, 128
          %s1949 = scalar_lea.hbm %s7, %s1948
          %s1951 = sshll.u32 %s1940, 4
          %s1952 = int_to_ptr.vmem [resolvable:$true] %s1951
          %1954 = dma.vmem_to_hbm [thread:$0]  %s1952, 256, %s1949, %s1937
        $region52: #{tpu_custom_call.1} parent=47 // pred_fallthru
          _
      $region48: #{tpu_custom_call.1} parent=5 // pred_fallthru
        _
      %p1955 = scmp.le.s32.totalorder 2, %s16
      // Predicated region
      $region53: #{tpu_custom_call.1} parent=5 // pred_check
        %p1956 = pneg %p1955
      $region54: #{tpu_custom_call.1} parent=5 // pred_check_branch
        %1958 = sbr.rel (%p1956) target = $region56
      $region55: #{tpu_custom_call.1} parent=5 // pred_region
        %s1959 = ssub.s32 %s16, 2
        // Predicated region
        $region57: #{tpu_custom_call.1} parent=55 // pred_check
          %p1960 = pneg %p197
        $region58: #{tpu_custom_call.1} parent=55 // pred_check_branch
          %1962 = sbr.rel (%p1960) target = $region60
        $region59: #{tpu_custom_call.1} parent=55 // pred_region
          %s1963 = sand.u32 %s182, 1
          %s1964 = scalar_lea.sflag [#allocation7], %s1963
          %s1965 = sand.u32 %s182, 1
          %s1966 = smul.addr %s1965, 16
          %s1967 = scalar_lea.vmem [#allocation6], %s1966
          %1968 = dma.done %s1964, 256
        $region60: #{tpu_custom_call.1} parent=55 // pred_fallthru
          _
      $region56: #{tpu_custom_call.1} parent=5 // pred_fallthru
        _
    $region6: #{tpu_custom_call.1} parent=1 // loop_footer
      %s20 = sadd.s32 1, %s16
    $region7: #{tpu_custom_call.1} parent=1 // loop_footer_branch
      %15 = sbr.rel target = $region3
    $region8: #{tpu_custom_call.1} parent=1 // loop_exit
      _
    %1969 = vsyncpa [#allocation7], 1
    %s1970 = scalar_lea.sflag [#allocation7], 1
    %1971 = vsyncpa %s1970, 1

</llo_original>
